<compile_context>
chip_gen: v5e
topology: v5e:2x2
jax: 0.10.0
libtpu: 0.0.40
codegen_flags: <defaults>
</compile_context>

<pallas_src>
import functools

import jax
import jax.numpy as jnp
from jax.experimental import pallas as pl
from jax.experimental.pallas import tpu as pltpu

EPS = 1e-5
LANE = 128
BLOCK_TARGET_BYTES = 1 << 20          # ~1 MiB activation slab per grid step
VMEM_LIMIT = 40 * 1024 * 1024         # fits v7x 64 MiB physical VMEM w/ headroom


# ----------------------------------------------------------------------------
# In-kernel helpers
# ----------------------------------------------------------------------------
def _conv3_nobias(v, halo, w_ref, is_first, is_last, fused):
    """3-tap 'same' conv (no bias) on one (C, TL) slab; L is the lane axis.

    halo : (C, 2) columns just left/right of this tile (zeros at true ends).
    w_ref: (Cout, 3C) stacked weights if `fused`, else (3, Cout, C) tap-major.
    """
    C, TL = v.shape
    v_m1 = jnp.where(is_first, jnp.broadcast_to(halo[:, 0:1], (C, TL)),
                     pltpu.roll(v, 1, axis=1))            # value at l-1
    v_p1 = jnp.where(is_last, jnp.broadcast_to(halo[:, 1:2], (C, TL)),
                     pltpu.roll(v, TL - 1, axis=1))       # value at l+1
    if fused:
        # aligned sublane concat (C is a multiple of 8) -> single K=3C matmul
        vs = jnp.concatenate([v_m1, v, v_p1], axis=0)     # (3C, TL)
        return jnp.dot(w_ref[...], vs, preferred_element_type=jnp.float32)
    return (jnp.dot(w_ref[0], v_m1, preferred_element_type=jnp.float32)
            + jnp.dot(w_ref[1], v, preferred_element_type=jnp.float32)
            + jnp.dot(w_ref[2], v_p1, preferred_element_type=jnp.float32))


def _conv1_kernel(x_ref, xh_ref, w_ref, b_ref, y_ref, edge_ref, st_ref,
                  s_sc, ss_sc, *, tl, seq_len, needs_mask, fused):
    """conv1 on a (Nb, Cin, TL) tile + tile-edge columns + BN1 partial stats."""
    nb, cin, _ = x_ref.shape
    cout = y_ref.shape[1]
    j = pl.program_id(1)

    @pl.when(j == 0)
    def _():
        s_sc[...] = jnp.zeros_like(s_sc)
        ss_sc[...] = jnp.zeros_like(ss_sc)

    lane_in = jax.lax.broadcasted_iota(jnp.int32, (cin, tl), 1)
    is_first = lane_in == 0
    is_last = lane_in == tl - 1
    if needs_mask:
        lane_out = jax.lax.broadcasted_iota(jnp.int32, (cout, tl), 1) + j * tl
        valid = lane_out < seq_len

    b = b_ref[...]
    s_tot = jnp.zeros((cout, 1), jnp.float32)
    ss_tot = jnp.zeros((cout, 1), jnp.float32)
    for bi in range(nb):
        y0 = _conv3_nobias(x_ref[bi], xh_ref[bi], w_ref, is_first, is_last, fused)
        ym = jnp.where(valid, y0, 0.0) if needs_mask else y0
        s_tot = s_tot + jnp.sum(ym, axis=1, keepdims=True)
        ss_tot = ss_tot + jnp.sum(ym * ym, axis=1, keepdims=True)
        y = y0 + b
        # first / last column of this tile -> pass-2 halos (no y1 re-read later)
        edge_ref[bi, :, 0:1] = y[:, 0:1]
        edge_ref[bi, :, 1:2] = y[:, tl - 1:tl]
        y_ref[bi] = y.astype(y_ref.dtype)

    s_sc[...] = s_sc[...] + s_tot
    ss_sc[...] = ss_sc[...] + ss_tot

    @pl.when(j == pl.num_programs(1) - 1)
    def _():
        st_ref[:, 0:1] = s_sc[...]
        st_ref[:, 1:2] = ss_sc[...]


def _conv2_kernel(y1_ref, hh_ref, sc_ref, sh_ref, w_ref, b_ref,
                  y2_ref, st_ref, s_sc, ss_sc, *, tl, seq_len, needs_mask, fused):
    """bn1+relu + conv2 on a (Nb, Cout, TL) tile + BN2 partial stats."""
    nb, cout, _ = y2_ref.shape
    j = pl.program_id(1)

    @pl.when(j == 0)
    def _():
        s_sc[...] = jnp.zeros_like(s_sc)
        ss_sc[...] = jnp.zeros_like(ss_sc)

    lane = jax.lax.broadcasted_iota(jnp.int32, (cout, tl), 1)
    is_first = lane == 0
    is_last = lane == tl - 1
    if needs_mask:
        valid = (lane + j * tl) < seq_len

    sc = sc_ref[...]
    sh = sh_ref[...]
    b = b_ref[...]
    s_tot = jnp.zeros((cout, 1), jnp.float32)
    ss_tot = jnp.zeros((cout, 1), jnp.float32)
    for bi in range(nb):
        h = jnp.maximum(sc * y1_ref[bi].astype(jnp.float32) + sh, 0.0)
        if needs_mask:
            h = jnp.where(valid, h, 0.0)       # zero the padded tail before taps
        y0 = _conv3_nobias(h, hh_ref[bi], w_ref, is_first, is_last, fused)
        ym = jnp.where(valid, y0, 0.0) if needs_mask else y0
        s_tot = s_tot + jnp.sum(ym, axis=1, keepdims=True)
        ss_tot = ss_tot + jnp.sum(ym * ym, axis=1, keepdims=True)
        y2_ref[bi] = (y0 + b).astype(y2_ref.dtype)

    s_sc[...] = s_sc[...] + s_tot
    ss_sc[...] = ss_sc[...] + ss_tot

    @pl.when(j == pl.num_programs(1) - 1)
    def _():
        st_ref[:, 0:1] = s_sc[...]
        st_ref[:, 1:2] = ss_sc[...]


def _bn2_relu_kernel(y2_ref, sc_ref, sh_ref, o_ref):
    sc = sc_ref[...]
    sh = sh_ref[...]
    for bi in range(o_ref.shape[0]):
        o_ref[bi] = jnp.maximum(y2_ref[bi].astype(jnp.float32) * sc + sh, 0.0)


# ----------------------------------------------------------------------------
# Wrapper helpers
# ----------------------------------------------------------------------------
def _round_up(x, m):
    return (x + m - 1) // m * m


def _pick_tiles(N, c_max, L):
    """Pick (Lp, TL, nj, Nb): padded length, lane tile, #L tiles, batch fold."""
    Lp = _round_up(L, LANE)
    # cap TL so a (c_max, TL) f32 slab stays <= ~2 MiB, but keep >= 128 lanes
    cap = max(LANE, min(2048, ((2 << 20) // (4 * c_max)) // LANE * LANE))
    tl = min(Lp, cap)
    while Lp % tl:
        tl -= LANE
    nj = Lp // tl
    nb = max(1, min(N, BLOCK_TARGET_BYTES // (4 * c_max * tl)))
    while N % nb:
        nb -= 1
    # keep >=2 grid steps on the "parallel" batch axis (v7x has 2 TensorCores)
    if (N // nb) * nj < 2 and nb > 1:
        nb = max(1, nb // 2)
        while N % nb:
            nb -= 1
    return Lp, tl, nj, nb


def _pack_w(w, fused):
    """PyTorch (Cout, Cin, 3) -> (Cout, 3Cin) stacked taps, or (3, Cout, Cin)."""
    w = w.astype(jnp.float32)
    if fused:
        return jnp.concatenate([w[:, :, 0], w[:, :, 1], w[:, :, 2]], axis=1)
    return jnp.transpose(w, (2, 0, 1))


def _x_halos(x, tl, nj):
    """(N, C, Lp) -> (N, nj, C, 2): columns just outside each L tile (0 at ends)."""
    n, c, _ = x.shape
    z = jnp.zeros((n, c, 1), jnp.float32)
    if nj > 1:
        lc = x[:, :, tl - 1:-1:tl]             # last col of tiles 0..nj-2
        rc = x[:, :, tl::tl]                   # first col of tiles 1..nj-1
        left = jnp.concatenate([z, lc], axis=2)
        right = jnp.concatenate([rc, z], axis=2)
    else:
        left = right = z
    return jnp.transpose(jnp.stack([left, right], axis=-1), (0, 2, 1, 3))


def _halos_from_edges(edges, sc, sh):
    """bn1+relu'd halo columns for pass 2 from pass-1 tile-edge columns.

    edges: (N, nj, Cout, 2) raw conv1 output at each tile's first/last column.
    Returns (N, nj, Cout, 2): [...,0] = column left of tile, [...,1] = right
    (exact zeros at the true sequence ends).
    """
    h = jnp.maximum(edges * sc[None, None] + sh[None, None], 0.0)
    n, _, c, _ = edges.shape
    z = jnp.zeros((n, 1, c, 1), jnp.float32)
    left = jnp.concatenate([z, h[:, :-1, :, 1:2]], axis=1)
    right = jnp.concatenate([h[:, 1:, :, 0:1], z], axis=1)
    return jnp.concatenate([left, right], axis=3)


def _finalize_bn(st, bias, gamma, beta, count):
    """(n_blocks, C, 2) partial sums of the *bias-free* conv -> scale/shift (C,1)."""
    s = jnp.sum(st[..., 0], axis=0)
    ss = jnp.sum(st[..., 1], axis=0)
    mean0 = s / count
    var = jnp.maximum(ss / count - mean0 * mean0, 0.0)   # biased (training BN)
    mean = mean0 + bias.astype(jnp.float32)              # bias-shifted stats
    scale = gamma.astype(jnp.float32) * jax.lax.rsqrt(var + EPS)
    shift = beta.astype(jnp.float32) - mean * scale
    return scale[:, None], shift[:, None]


# ----------------------------------------------------------------------------
# Forward
# ----------------------------------------------------------------------------
@functools.partial(jax.jit, static_argnames=("inter_dtype",))
def convblock1d_forward(x, w1, b1, g1, be1, w2, b2, g2, be2,
                        *, inter_dtype=jnp.bfloat16):
    """x: (N, Cin, L) as in PyTorch.  Returns (N, Cout, L) float32."""
    N, Cin, L = x.shape
    Cout = w1.shape[0]
    Lp, TL, nj, Nb = _pick_tiles(N, max(Cin, Cout), L)
    needs_mask = Lp > L
    grid = (N // Nb, nj)

    x = x.astype(jnp.float32)
    if needs_mask:
        x = jnp.pad(x, ((0, 0), (0, 0), (0, Lp - L)))

    fused1 = Cin % 8 == 0
    fused2 = Cout % 8 == 0
    w1p = _pack_w(w1, fused1)
    w2p = _pack_w(w2, fused2)
    b1c = b1.astype(jnp.float32)[:, None]
    b2c = b2.astype(jnp.float32)[:, None]

    cparams_acc = pltpu.CompilerParams(
        dimension_semantics=("parallel", "arbitrary"),   # stats accumulate over j
        vmem_limit_bytes=VMEM_LIMIT)
    cparams_par = pltpu.CompilerParams(
        dimension_semantics=("parallel", "parallel"),
        vmem_limit_bytes=VMEM_LIMIT)

    def act_spec(C):            # lane-dense (Nb, C, TL) slab per grid step
        return pl.BlockSpec((Nb, C, TL), lambda n, j: (n, 0, j))

    def halo_spec(C):           # per-tile halo / edge columns
        return pl.BlockSpec((Nb, None, C, 2), lambda n, j: (n, j, 0, 0))

    stats_spec = pl.BlockSpec((None, Cout, 2), lambda n, j: (n, 0, 0))

    def const_spec(shape):      # small weights / per-channel vectors
        return pl.BlockSpec(shape, lambda n, j: (0,) * len(shape))

    def stat_scratch():
        return [pltpu.VMEM((Cout, 1), jnp.float32),
                pltpu.VMEM((Cout, 1), jnp.float32)]

    act_shape = lambda dt: jax.ShapeDtypeStruct((N, Cout, Lp), dt)
    edges_shape = jax.ShapeDtypeStruct((N, nj, Cout, 2), jnp.float32)
    stats_shape = jax.ShapeDtypeStruct((N // Nb, Cout, 2), jnp.float32)
    count = float(N * L)

    # ---- pass 1: conv1 + tile-edge columns + BN1 partial stats --------------
    k1 = functools.partial(_conv1_kernel, tl=TL, seq_len=L,
                           needs_mask=needs_mask, fused=fused1)
    y1, edges1, st1 = pl.pallas_call(
        k1, grid=grid,
        in_specs=[act_spec(Cin), halo_spec(Cin),
                  const_spec(w1p.shape), const_spec((Cout, 1))],
        out_specs=(act_spec(Cout), halo_spec(Cout), stats_spec),
        out_shape=(act_shape(inter_dtype), edges_shape, stats_shape),
        scratch_shapes=stat_scratch(),
        compiler_params=cparams_acc,
    )(x, _x_halos(x, TL, nj), w1p, b1c)

    sc1, sh1 = _finalize_bn(st1, b1, g1, be1, count)

    # ---- pass 2: bn1+relu + conv2 + BN2 partial stats ------------------------
    # Halos are rebuilt from pass-1 edge columns (no strided y1 re-read).
    k2 = functools.partial(_conv2_kernel, tl=TL, seq_len=L,
                           needs_mask=needs_mask, fused=fused2)
    y2, st2 = pl.pallas_call(
        k2, grid=grid,
        in_specs=[act_spec(Cout), halo_spec(Cout),
                  const_spec((Cout, 1)), const_spec((Cout, 1)),
                  const_spec(w2p.shape), const_spec((Cout, 1))],
        out_specs=(act_spec(Cout), stats_spec),
        out_shape=(act_shape(inter_dtype), stats_shape),
        scratch_shapes=stat_scratch(),
        compiler_params=cparams_acc,
    )(y1, _halos_from_edges(edges1, sc1, sh1), sc1, sh1, w2p, b2c)

    sc2, sh2 = _finalize_bn(st2, b2, g2, be2, count)

    # ---- pass 3: bn2 + relu ---------------------------------------------------
    out = pl.pallas_call(
        _bn2_relu_kernel, grid=grid,
        in_specs=[act_spec(Cout), const_spec((Cout, 1)), const_spec((Cout, 1))],
        out_specs=act_spec(Cout),
        out_shape=act_shape(jnp.float32),
        compiler_params=cparams_par,
    )(y2, sc2, sh2)

    return out[:, :, :L] if needs_mask else out


# ----------------------------------------------------------------------------
# Pure-JAX reference matching PyTorch semantics (training-mode BN)
# ----------------------------------------------------------------------------
def reference_forward(x_ncl, w1, b1, g1, be1, w2, b2, g2, be2):
    def conv(x, W, b):
        y = jax.lax.conv_general_dilated(
            x, W, window_strides=(1,), padding=((1, 1),),
            dimension_numbers=('NCH', 'OIH', 'NCH'))
        return y + b[None, :, None]

    def bn(x, g, be):
        m = jnp.mean(x, axis=(0, 2), keepdims=True)
        v = jnp.mean((x - m) ** 2, axis=(0, 2), keepdims=True)
        return g[None, :, None] * (x - m) / jnp.sqrt(v + EPS) + be[None, :, None]

    h = jax.nn.relu(bn(conv(x_ncl, w1, b1), g1, be1))
    return jax.nn.relu(bn(conv(h, w2, b2), g2, be2))


if __name__ == "__main__":
    N, IN_CH, OUT_CH, L = 2, 4, 8, 16

    key = jax.random.PRNGKey(0)
    ks = jax.random.split(key, 9)
    x = jax.random.normal(ks[0], (N, IN_CH, L), jnp.float32)

    # Deterministic synthetic parameters (shapes match nn.Conv1d / nn.BatchNorm1d).
    w1 = 0.3 * jax.random.normal(ks[1], (OUT_CH, IN_CH, 3), jnp.float32)
    b1 = 0.1 * jax.random.normal(ks[2], (OUT_CH,), jnp.float32)
    g1 = 1.0 + 0.1 * jax.random.normal(ks[3], (OUT_CH,), jnp.float32)
    be1 = 0.1 * jax.random.normal(ks[4], (OUT_CH,), jnp.float32)
    w2 = 0.3 * jax.random.normal(ks[5], (OUT_CH, OUT_CH, 3), jnp.float32)
    b2 = 0.1 * jax.random.normal(ks[6], (OUT_CH,), jnp.float32)
    g2 = 1.0 + 0.1 * jax.random.normal(ks[7], (OUT_CH,), jnp.float32)
    be2 = 0.1 * jax.random.normal(ks[8], (OUT_CH,), jnp.float32)

    ref = reference_forward(x, w1, b1, g1, be1, w2, b2, g2, be2)

    # f32-intermediate mode: strict parity with the f32 reference.
    out32 = jax.block_until_ready(
        convblock1d_forward(x, w1, b1, g1, be1, w2, b2, g2, be2,
                            inter_dtype=jnp.float32))
    assert out32.shape == (N, OUT_CH, L)
    err32 = float(jnp.max(jnp.abs(out32 - ref)))
    assert jnp.allclose(out32, ref, atol=5e-4, rtol=5e-4), (
        "f32 path mismatch: max abs err %e" % err32)

    # Default fast path: bf16 intermediates (halves y1/y2 HBM traffic).
    out = jax.block_until_ready(
        convblock1d_forward(x, w1, b1, g1, be1, w2, b2, g2, be2))
    assert out.shape == (N, OUT_CH, L)
    errbf = float(jnp.max(jnp.abs(out - ref)))
    assert jnp.allclose(out, ref, atol=5e-2, rtol=5e-2), (
        "bf16 path mismatch: max abs err %e" % errbf)

    print("KERNEL_OK")
</pallas_src>

<mosaic_0001>
module attributes {stable_mosaic.version = 11 : i64} {
  func.func @_conv1_kernel(%arg0: i32, %arg1: i32, %arg2: memref<1x4x128xf32, #tpu.memory_space<vmem>>, %arg3: memref<1x1x4x2xf32, #tpu.memory_space<vmem>>, %arg4: memref<3x8x4xf32, #tpu.memory_space<vmem>>, %arg5: memref<8x1xf32, #tpu.memory_space<vmem>>, %arg6: memref<1x8x128xf32, #tpu.memory_space<vmem>>, %arg7: memref<1x1x8x2xf32, #tpu.memory_space<vmem>>, %arg8: memref<1x8x2xf32, #tpu.memory_space<vmem>>, %arg9: memref<8x1xf32, #tpu.memory_space<vmem>>, %arg10: memref<8x1xf32, #tpu.memory_space<vmem>>) attributes {dimension_semantics = [#tpu.dimension_semantics<parallel>, #tpu.dimension_semantics<arbitrary>], iteration_bounds = array<i64: 2, 1>, scalar_prefetch = 0 : i64, scratch_operands = 2 : i64, tpu.core_type = #tpu.core_type<tc>, window_params = [{transform_indices = @transform_0, window_bounds = array<i64: 1, 4, 128>}, {transform_indices = @transform_1, window_bounds = array<i64: 1, 1, 4, 2>}, {pipeline_mode = #tpu.pipeline_mode<synchronous>, transform_indices = @transform_2, window_bounds = array<i64: 3, 8, 4>}, {pipeline_mode = #tpu.pipeline_mode<synchronous>, transform_indices = @transform_3, window_bounds = array<i64: 8, 1>}, {transform_indices = @transform_4, window_bounds = array<i64: 1, 8, 128>}, {transform_indices = @transform_5, window_bounds = array<i64: 1, 1, 8, 2>}, {transform_indices = @transform_6, window_bounds = array<i64: 1, 8, 2>}]} {
    %c0_i32 = arith.constant 0 : i32
    %0 = arith.cmpi eq, %arg1, %c0_i32 : i32
    %1 = arith.extui %0 : i1 to i32
    %c0_i32_0 = arith.constant 0 : i32
    %2 = arith.cmpi ne, %1, %c0_i32_0 : i32
    scf.if %2 {
      %cst_46 = arith.constant 0.000000e+00 : f32
      %73 = vector.broadcast %cst_46 : f32 to vector<8x1xf32>
      %c0_47 = arith.constant 0 : index
      %c0_48 = arith.constant 0 : index
      %74 = vector.load %arg9[%c0_47, %c0_48] : memref<8x1xf32, #tpu.memory_space<vmem>>, vector<8x1xf32>
      tpu.vector_store %arg9[%c0_47, %c0_48], %73 {strides = array<i32>} : memref<8x1xf32, #tpu.memory_space<vmem>>, vector<8x1xf32>,
      %cst_49 = arith.constant 0.000000e+00 : f32
      %75 = vector.broadcast %cst_49 : f32 to vector<8x1xf32>
      %c0_50 = arith.constant 0 : index
      %c0_51 = arith.constant 0 : index
      %76 = vector.load %arg10[%c0_50, %c0_51] : memref<8x1xf32, #tpu.memory_space<vmem>>, vector<8x1xf32>
      tpu.vector_store %arg10[%c0_50, %c0_51], %75 {strides = array<i32>} : memref<8x1xf32, #tpu.memory_space<vmem>>, vector<8x1xf32>,
    } else {
    }
    %3 = tpu.iota {dimensions = array<i32: 1>} : vector<4x128xi32>
    %c0_i32_1 = arith.constant 0 : i32
    %4 = vector.broadcast %c0_i32_1 : i32 to vector<4x128xi32>
    %5 = arith.cmpi eq, %3, %4 : vector<4x128xi32>
    %c127_i32 = arith.constant 127 : i32
    %6 = vector.broadcast %c127_i32 : i32 to vector<4x128xi32>
    %7 = arith.cmpi eq, %3, %6 : vector<4x128xi32>
    %8 = tpu.iota {dimensions = array<i32: 1>} : vector<8x128xi32>
    %c128_i32 = arith.constant 128 : i32
    %9 = arith.muli %arg1, %c128_i32 : i32
    %10 = vector.broadcast %9 : i32 to vector<8x128xi32>
    %11 = arith.addi %8, %10 : vector<8x128xi32>
    %c16_i32 = arith.constant 16 : i32
    %12 = vector.broadcast %c16_i32 : i32 to vector<8x128xi32>
    %13 = arith.cmpi slt, %11, %12 : vector<8x128xi32>
    %c0 = arith.constant 0 : index
    %c0_2 = arith.constant 0 : index
    %14 = vector.load %arg5[%c0, %c0_2] : memref<8x1xf32, #tpu.memory_space<vmem>>, vector<8x1xf32>
    %cst = arith.constant 0.000000e+00 : f32
    %15 = vector.broadcast %cst : f32 to vector<8x1xf32>
    %cst_3 = arith.constant 0.000000e+00 : f32
    %16 = vector.broadcast %cst_3 : f32 to vector<8x1xf32>
    %c0_4 = arith.constant 0 : index
    %c0_5 = arith.constant 0 : index
    %c0_6 = arith.constant 0 : index
    %17 = vector.load %arg2[%c0_4, %c0_5, %c0_6] : memref<1x4x128xf32, #tpu.memory_space<vmem>>, vector<1x4x128xf32>
    %18 = vector.shape_cast %17 : vector<1x4x128xf32> to vector<4x128xf32>
    %c0_7 = arith.constant 0 : index
    %c0_8 = arith.constant 0 : index
    %c0_9 = arith.constant 0 : index
    %c0_10 = arith.constant 0 : index
    %19 = vector.load %arg3[%c0_7, %c0_8, %c0_9, %c0_10] : memref<1x1x4x2xf32, #tpu.memory_space<vmem>>, vector<1x1x4x2xf32>
    %20 = vector.shape_cast %19 : vector<1x1x4x2xf32> to vector<4x2xf32>
    %21 = vector.extract_strided_slice %20 {offsets = [0, 0], sizes = [4, 1], strides = [1, 1]} : vector<4x2xf32> to vector<4x1xf32>
    %22 = vector.shape_cast %21 : vector<4x1xf32> to vector<4x1xf32>
    %23 = vector.broadcast %22 : vector<4x1xf32> to vector<4x128xf32>
    %c1_i32 = arith.constant 1 : i32
    %24 = tpu.dynamic_rotate %18 by %c1_i32 dim 1 : vector<4x128xf32>, i32 -> vector<4x128xf32>
    %25 = arith.select %5, %23, %24 : vector<4x128xi1>, vector<4x128xf32>
    %26 = vector.extract_strided_slice %20 {offsets = [0, 1], sizes = [4, 1], strides = [1, 1]} : vector<4x2xf32> to vector<4x1xf32>
    %27 = vector.shape_cast %26 : vector<4x1xf32> to vector<4x1xf32>
    %28 = vector.broadcast %27 : vector<4x1xf32> to vector<4x128xf32>
    %c127_i32_11 = arith.constant 127 : i32
    %29 = tpu.dynamic_rotate %18 by %c127_i32_11 dim 1 : vector<4x128xf32>, i32 -> vector<4x128xf32>
    %30 = arith.select %7, %28, %29 : vector<4x128xi1>, vector<4x128xf32>
    %c0_12 = arith.constant 0 : index
    %c0_13 = arith.constant 0 : index
    %c0_14 = arith.constant 0 : index
    %31 = vector.load %arg4[%c0_12, %c0_13, %c0_14] : memref<3x8x4xf32, #tpu.memory_space<vmem>>, vector<1x8x4xf32>
    %32 = vector.shape_cast %31 : vector<1x8x4xf32> to vector<8x4xf32>
    %cst_15 = arith.constant dense<0.000000e+00> : vector<8x128xf32>
    %33 = tpu.matmul %32, %25, %cst_15 {dimension_numbers = #tpu.dot_dimension_numbers<[1], [0], [0], [1], [0, 0, 1, 1], [], []>} : vector<8x4xf32>, vector<4x128xf32>, vector<8x128xf32> -> vector<8x128xf32>
    %c1 = arith.constant 1 : index
    %c0_16 = arith.constant 0 : index
    %c0_17 = arith.constant 0 : index
    %34 = vector.load %arg4[%c1, %c0_16, %c0_17] : memref<3x8x4xf32, #tpu.memory_space<vmem>>, vector<1x8x4xf32>
    %35 = vector.shape_cast %34 : vector<1x8x4xf32> to vector<8x4xf32>
    %cst_18 = arith.constant dense<0.000000e+00> : vector<8x128xf32>
    %36 = tpu.matmul %35, %18, %cst_18 {dimension_numbers = #tpu.dot_dimension_numbers<[1], [0], [0], [1], [0, 0, 1, 1], [], []>} : vector<8x4xf32>, vector<4x128xf32>, vector<8x128xf32> -> vector<8x128xf32>
    %37 = arith.addf %33, %36 : vector<8x128xf32>
    %c2 = arith.constant 2 : index
    %c0_19 = arith.constant 0 : index
    %c0_20 = arith.constant 0 : index
    %38 = vector.load %arg4[%c2, %c0_19, %c0_20] : memref<3x8x4xf32, #tpu.memory_space<vmem>>, vector<1x8x4xf32>
    %39 = vector.shape_cast %38 : vector<1x8x4xf32> to vector<8x4xf32>
    %cst_21 = arith.constant dense<0.000000e+00> : vector<8x128xf32>
    %40 = tpu.matmul %39, %30, %cst_21 {dimension_numbers = #tpu.dot_dimension_numbers<[1], [0], [0], [1], [0, 0, 1, 1], [], []>} : vector<8x4xf32>, vector<4x128xf32>, vector<8x128xf32> -> vector<8x128xf32>
    %41 = arith.addf %37, %40 : vector<8x128xf32>
    %cst_22 = arith.constant 0.000000e+00 : f32
    %42 = vector.broadcast %cst_22 : f32 to vector<8x128xf32>
    %43 = arith.select %13, %41, %42 : vector<8x128xi1>, vector<8x128xf32>
    %cst_23 = arith.constant dense<0.000000e+00> : vector<8xf32>
    %44 = vector.multi_reduction <add>, %43, %cst_23 [1] : vector<8x128xf32> to vector<8xf32>
    %45 = vector.shape_cast %44 : vector<8xf32> to vector<8x1xf32>
    %46 = arith.addf %15, %45 : vector<8x1xf32>
    %47 = arith.mulf %43, %43 : vector<8x128xf32>
    %cst_24 = arith.constant dense<0.000000e+00> : vector<8xf32>
    %48 = vector.multi_reduction <add>, %47, %cst_24 [1] : vector<8x128xf32> to vector<8xf32>
    %49 = vector.shape_cast %48 : vector<8xf32> to vector<8x1xf32>
    %50 = arith.addf %16, %49 : vector<8x1xf32>
    %51 = vector.broadcast %14 : vector<8x1xf32> to vector<8x128xf32>
    %52 = arith.addf %41, %51 : vector<8x128xf32>
    %53 = vector.extract_strided_slice %52 {offsets = [0, 0], sizes = [8, 1], strides = [1, 1]} : vector<8x128xf32> to vector<8x1xf32>
    %c0_25 = arith.constant 0 : index
    %c0_26 = arith.constant 0 : index
    %c0_27 = arith.constant 0 : index
    %c0_28 = arith.constant 0 : index
    %54 = vector.load %arg7[%c0_25, %c0_26, %c0_27, %c0_28] : memref<1x1x8x2xf32, #tpu.memory_space<vmem>>, vector<1x1x8x1xf32>
    %55 = vector.shape_cast %54 : vector<1x1x8x1xf32> to vector<8x1xf32>
    %56 = vector.shape_cast %53 : vector<8x1xf32> to vector<1x1x8x1xf32>
    tpu.vector_store %arg7[%c0_25, %c0_26, %c0_27, %c0_28], %56 {strides = array<i32>} : memref<1x1x8x2xf32, #tpu.memory_space<vmem>>, vector<1x1x8x1xf32>,
    %57 = vector.extract_strided_slice %52 {offsets = [0, 127], sizes = [8, 1], strides = [1, 1]} : vector<8x128xf32> to vector<8x1xf32>
    %c0_29 = arith.constant 0 : index
    %c0_30 = arith.constant 0 : index
    %c0_31 = arith.constant 0 : index
    %c1_32 = arith.constant 1 : index
    %58 = vector.load %arg7[%c0_29, %c0_30, %c0_31, %c1_32] : memref<1x1x8x2xf32, #tpu.memory_space<vmem>>, vector<1x1x8x1xf32>
    %59 = vector.shape_cast %58 : vector<1x1x8x1xf32> to vector<8x1xf32>
    %60 = vector.shape_cast %57 : vector<8x1xf32> to vector<1x1x8x1xf32>
    tpu.vector_store %arg7[%c0_29, %c0_30, %c0_31, %c1_32], %60 {strides = array<i32>} : memref<1x1x8x2xf32, #tpu.memory_space<vmem>>, vector<1x1x8x1xf32>,
    %c0_33 = arith.constant 0 : index
    %c0_34 = arith.constant 0 : index
    %c0_35 = arith.constant 0 : index
    %61 = vector.load %arg6[%c0_33, %c0_34, %c0_35] : memref<1x8x128xf32, #tpu.memory_space<vmem>>, vector<1x8x128xf32>
    %62 = vector.shape_cast %61 : vector<1x8x128xf32> to vector<8x128xf32>
    %63 = vector.shape_cast %52 : vector<8x128xf32> to vector<1x8x128xf32>
    tpu.vector_store %arg6[%c0_33, %c0_34, %c0_35], %63 {strides = array<i32>} : memref<1x8x128xf32, #tpu.memory_space<vmem>>, vector<1x8x128xf32>,
    %c0_36 = arith.constant 0 : index
    %c0_37 = arith.constant 0 : index
    %64 = vector.load %arg9[%c0_36, %c0_37] : memref<8x1xf32, #tpu.memory_space<vmem>>, vector<8x1xf32>
    %65 = arith.addf %64, %46 : vector<8x1xf32>
    %c0_38 = arith.constant 0 : index
    %c0_39 = arith.constant 0 : index
    %66 = vector.load %arg9[%c0_38, %c0_39] : memref<8x1xf32, #tpu.memory_space<vmem>>, vector<8x1xf32>
    tpu.vector_store %arg9[%c0_38, %c0_39], %65 {strides = array<i32>} : memref<8x1xf32, #tpu.memory_space<vmem>>, vector<8x1xf32>,
    %c0_40 = arith.constant 0 : index
    %c0_41 = arith.constant 0 : index
    %67 = vector.load %arg10[%c0_40, %c0_41] : memref<8x1xf32, #tpu.memory_space<vmem>>, vector<8x1xf32>
    %68 = arith.addf %67, %50 : vector<8x1xf32>
    %c0_42 = arith.constant 0 : index
    %c0_43 = arith.constant 0 : index
    %69 = vector.load %arg10[%c0_42, %c0_43] : memref<8x1xf32, #tpu.memory_space<vmem>>, vector<8x1xf32>
    tpu.vector_store %arg10[%c0_42, %c0_43], %68 {strides = array<i32>} : memref<8x1xf32, #tpu.memory_space<vmem>>, vector<8x1xf32>,
    %c0_i32_44 = arith.constant 0 : i32
    %70 = arith.cmpi eq, %arg1, %c0_i32_44 : i32
    %71 = arith.extui %70 : i1 to i32
    %c0_i32_45 = arith.constant 0 : i32
    %72 = arith.cmpi ne, %71, %c0_i32_45 : i32
    scf.if %72 {
      %c0_46 = arith.constant 0 : index
      %c0_47 = arith.constant 0 : index
      %73 = vector.load %arg9[%c0_46, %c0_47] : memref<8x1xf32, #tpu.memory_space<vmem>>, vector<8x1xf32>
      %c0_48 = arith.constant 0 : index
      %c0_49 = arith.constant 0 : index
      %c0_50 = arith.constant 0 : index
      %74 = vector.load %arg8[%c0_48, %c0_49, %c0_50] : memref<1x8x2xf32, #tpu.memory_space<vmem>>, vector<1x8x1xf32>
      %75 = vector.shape_cast %74 : vector<1x8x1xf32> to vector<8x1xf32>
      %76 = vector.shape_cast %73 : vector<8x1xf32> to vector<1x8x1xf32>
      tpu.vector_store %arg8[%c0_48, %c0_49, %c0_50], %76 {strides = array<i32>} : memref<1x8x2xf32, #tpu.memory_space<vmem>>, vector<1x8x1xf32>,
      %c0_51 = arith.constant 0 : index
      %c0_52 = arith.constant 0 : index
      %77 = vector.load %arg10[%c0_51, %c0_52] : memref<8x1xf32, #tpu.memory_space<vmem>>, vector<8x1xf32>
      %c0_53 = arith.constant 0 : index
      %c0_54 = arith.constant 0 : index
      %c1_55 = arith.constant 1 : index
      %78 = vector.load %arg8[%c0_53, %c0_54, %c1_55] : memref<1x8x2xf32, #tpu.memory_space<vmem>>, vector<1x8x1xf32>
      %79 = vector.shape_cast %78 : vector<1x8x1xf32> to vector<8x1xf32>
      %80 = vector.shape_cast %77 : vector<8x1xf32> to vector<1x8x1xf32>
      tpu.vector_store %arg8[%c0_53, %c0_54, %c1_55], %80 {strides = array<i32>} : memref<1x8x2xf32, #tpu.memory_space<vmem>>, vector<1x8x1xf32>,
    } else {
    }
    return
  }
  func.func @transform_0(%arg0: i32, %arg1: i32) -> (i32, i32, i32) {
    %c0_i32 = arith.constant 0 : i32
    %c0_i32_0 = arith.constant 0 : i32
    return %arg0, %c0_i32, %arg1 : i32, i32, i32
  }
  func.func @transform_1(%arg0: i32, %arg1: i32) -> (i32, i32, i32, i32) {
    %c0_i32 = arith.constant 0 : i32
    %c0_i32_0 = arith.constant 0 : i32
    %c0_i32_1 = arith.constant 0 : i32
    return %arg0, %arg1, %c0_i32, %c0_i32_0 : i32, i32, i32, i32
  }
  func.func @transform_2(%arg0: i32, %arg1: i32) -> (i32, i32, i32) {
    %c0_i32 = arith.constant 0 : i32
    %c0_i32_0 = arith.constant 0 : i32
    %c0_i32_1 = arith.constant 0 : i32
    %c0_i32_2 = arith.constant 0 : i32
    return %c0_i32, %c0_i32_0, %c0_i32_1 : i32, i32, i32
  }
  func.func @transform_3(%arg0: i32, %arg1: i32) -> (i32, i32) {
    %c0_i32 = arith.constant 0 : i32
    %c0_i32_0 = arith.constant 0 : i32
    %c0_i32_1 = arith.constant 0 : i32
    return %c0_i32, %c0_i32_0 : i32, i32
  }
  func.func @transform_4(%arg0: i32, %arg1: i32) -> (i32, i32, i32) {
    %c0_i32 = arith.constant 0 : i32
    %c0_i32_0 = arith.constant 0 : i32
    return %arg0, %c0_i32, %arg1 : i32, i32, i32
  }
  func.func @transform_5(%arg0: i32, %arg1: i32) -> (i32, i32, i32, i32) {
    %c0_i32 = arith.constant 0 : i32
    %c0_i32_0 = arith.constant 0 : i32
    %c0_i32_1 = arith.constant 0 : i32
    return %arg0, %arg1, %c0_i32, %c0_i32_0 : i32, i32, i32, i32
  }
  func.func @transform_6(%arg0: i32, %arg1: i32) -> (i32, i32, i32) {
    %c0_i32 = arith.constant 0 : i32
    %c0_i32_0 = arith.constant 0 : i32
    %c0_i32_1 = arith.constant 0 : i32
    return %arg0, %c0_i32, %c0_i32_0 : i32, i32, i32
  }
}

module attributes {stable_mosaic.version = 11 : i64} {
  func.func @_bn2_relu_kernel(%arg0: i32, %arg1: i32, %arg2: memref<1x8x128xf32, #tpu.memory_space<vmem>>, %arg3: memref<8x1xf32, #tpu.memory_space<vmem>>, %arg4: memref<8x1xf32, #tpu.memory_space<vmem>>, %arg5: memref<1x8x128xf32, #tpu.memory_space<vmem>>) attributes {dimension_semantics = [#tpu.dimension_semantics<parallel>, #tpu.dimension_semantics<parallel>], iteration_bounds = array<i64: 2, 1>, scalar_prefetch = 0 : i64, scratch_operands = 0 : i64, tpu.core_type = #tpu.core_type<tc>, window_params = [{transform_indices = @transform_0, window_bounds = array<i64: 1, 8, 128>}, {pipeline_mode = #tpu.pipeline_mode<synchronous>, transform_indices = @transform_1, window_bounds = array<i64: 8, 1>}, {pipeline_mode = #tpu.pipeline_mode<synchronous>, transform_indices = @transform_2, window_bounds = array<i64: 8, 1>}, {transform_indices = @transform_3, window_bounds = array<i64: 1, 8, 128>}]} {
    %c0 = arith.constant 0 : index
    %c0_0 = arith.constant 0 : index
    %0 = vector.load %arg3[%c0, %c0_0] : memref<8x1xf32, #tpu.memory_space<vmem>>, vector<8x1xf32>
    %c0_1 = arith.constant 0 : index
    %c0_2 = arith.constant 0 : index
    %1 = vector.load %arg4[%c0_1, %c0_2] : memref<8x1xf32, #tpu.memory_space<vmem>>, vector<8x1xf32>
    %c0_3 = arith.constant 0 : index
    %c0_4 = arith.constant 0 : index
    %c0_5 = arith.constant 0 : index
    %2 = vector.load %arg2[%c0_3, %c0_4, %c0_5] : memref<1x8x128xf32, #tpu.memory_space<vmem>>, vector<1x8x128xf32>
    %3 = vector.shape_cast %2 : vector<1x8x128xf32> to vector<8x128xf32>
    %4 = vector.broadcast %0 : vector<8x1xf32> to vector<8x128xf32>
    %5 = arith.mulf %3, %4 : vector<8x128xf32>
    %6 = vector.broadcast %1 : vector<8x1xf32> to vector<8x128xf32>
    %7 = arith.addf %5, %6 : vector<8x128xf32>
    %cst = arith.constant 0.000000e+00 : f32
    %8 = vector.broadcast %cst : f32 to vector<8x128xf32>
    %9 = arith.maximumf %7, %8 : vector<8x128xf32>
    %c0_6 = arith.constant 0 : index
    %c0_7 = arith.constant 0 : index
    %c0_8 = arith.constant 0 : index
    %10 = vector.load %arg5[%c0_6, %c0_7, %c0_8] : memref<1x8x128xf32, #tpu.memory_space<vmem>>, vector<1x8x128xf32>
    %11 = vector.shape_cast %10 : vector<1x8x128xf32> to vector<8x128xf32>
    %12 = vector.shape_cast %9 : vector<8x128xf32> to vector<1x8x128xf32>
    tpu.vector_store %arg5[%c0_6, %c0_7, %c0_8], %12 {strides = array<i32>} : memref<1x8x128xf32, #tpu.memory_space<vmem>>, vector<1x8x128xf32>,
    return
  }
  func.func @transform_0(%arg0: i32, %arg1: i32) -> (i32, i32, i32) {
    %c0_i32 = arith.constant 0 : i32
    %c0_i32_0 = arith.constant 0 : i32
    return %arg0, %c0_i32, %arg1 : i32, i32, i32
  }
  func.func @transform_1(%arg0: i32, %arg1: i32) -> (i32, i32) {
    %c0_i32 = arith.constant 0 : i32
    %c0_i32_0 = arith.constant 0 : i32
    %c0_i32_1 = arith.constant 0 : i32
    return %c0_i32, %c0_i32_0 : i32, i32
  }
  func.func @transform_2(%arg0: i32, %arg1: i32) -> (i32, i32) {
    %c0_i32 = arith.constant 0 : i32
    %c0_i32_0 = arith.constant 0 : i32
    %c0_i32_1 = arith.constant 0 : i32
    return %c0_i32, %c0_i32_0 : i32, i32
  }
  func.func @transform_3(%arg0: i32, %arg1: i32) -> (i32, i32, i32) {
    %c0_i32 = arith.constant 0 : i32
    %c0_i32_0 = arith.constant 0 : i32
    return %arg0, %c0_i32, %arg1 : i32, i32, i32
  }
}

module attributes {stable_mosaic.version = 11 : i64} {
  func.func @_conv2_kernel(%arg0: i32, %arg1: i32, %arg2: memref<1x8x128xf32, #tpu.memory_space<vmem>>, %arg3: memref<1x1x8x2xf32, #tpu.memory_space<vmem>>, %arg4: memref<8x1xf32, #tpu.memory_space<vmem>>, %arg5: memref<8x1xf32, #tpu.memory_space<vmem>>, %arg6: memref<8x24xf32, #tpu.memory_space<vmem>>, %arg7: memref<8x1xf32, #tpu.memory_space<vmem>>, %arg8: memref<1x8x128xf32, #tpu.memory_space<vmem>>, %arg9: memref<1x8x2xf32, #tpu.memory_space<vmem>>, %arg10: memref<8x1xf32, #tpu.memory_space<vmem>>, %arg11: memref<8x1xf32, #tpu.memory_space<vmem>>) attributes {dimension_semantics = [#tpu.dimension_semantics<parallel>, #tpu.dimension_semantics<arbitrary>], iteration_bounds = array<i64: 2, 1>, scalar_prefetch = 0 : i64, scratch_operands = 2 : i64, tpu.core_type = #tpu.core_type<tc>, window_params = [{transform_indices = @transform_0, window_bounds = array<i64: 1, 8, 128>}, {transform_indices = @transform_1, window_bounds = array<i64: 1, 1, 8, 2>}, {pipeline_mode = #tpu.pipeline_mode<synchronous>, transform_indices = @transform_2, window_bounds = array<i64: 8, 1>}, {pipeline_mode = #tpu.pipeline_mode<synchronous>, transform_indices = @transform_3, window_bounds = array<i64: 8, 1>}, {pipeline_mode = #tpu.pipeline_mode<synchronous>, transform_indices = @transform_4, window_bounds = array<i64: 8, 24>}, {pipeline_mode = #tpu.pipeline_mode<synchronous>, transform_indices = @transform_5, window_bounds = array<i64: 8, 1>}, {transform_indices = @transform_6, window_bounds = array<i64: 1, 8, 128>}, {transform_indices = @transform_7, window_bounds = array<i64: 1, 8, 2>}]} {
    %c0_i32 = arith.constant 0 : i32
    %0 = arith.cmpi eq, %arg1, %c0_i32 : i32
    %1 = arith.extui %0 : i1 to i32
    %c0_i32_0 = arith.constant 0 : i32
    %2 = arith.cmpi ne, %1, %c0_i32_0 : i32
    scf.if %2 {
      %cst_37 = arith.constant 0.000000e+00 : f32
      %66 = vector.broadcast %cst_37 : f32 to vector<8x1xf32>
      %c0_38 = arith.constant 0 : index
      %c0_39 = arith.constant 0 : index
      %67 = vector.load %arg10[%c0_38, %c0_39] : memref<8x1xf32, #tpu.memory_space<vmem>>, vector<8x1xf32>
      tpu.vector_store %arg10[%c0_38, %c0_39], %66 {strides = array<i32>} : memref<8x1xf32, #tpu.memory_space<vmem>>, vector<8x1xf32>,
      %cst_40 = arith.constant 0.000000e+00 : f32
      %68 = vector.broadcast %cst_40 : f32 to vector<8x1xf32>
      %c0_41 = arith.constant 0 : index
      %c0_42 = arith.constant 0 : index
      %69 = vector.load %arg11[%c0_41, %c0_42] : memref<8x1xf32, #tpu.memory_space<vmem>>, vector<8x1xf32>
      tpu.vector_store %arg11[%c0_41, %c0_42], %68 {strides = array<i32>} : memref<8x1xf32, #tpu.memory_space<vmem>>, vector<8x1xf32>,
    } else {
    }
    %3 = tpu.iota {dimensions = array<i32: 1>} : vector<8x128xi32>
    %c0_i32_1 = arith.constant 0 : i32
    %4 = vector.broadcast %c0_i32_1 : i32 to vector<8x128xi32>
    %5 = arith.cmpi eq, %3, %4 : vector<8x128xi32>
    %c127_i32 = arith.constant 127 : i32
    %6 = vector.broadcast %c127_i32 : i32 to vector<8x128xi32>
    %7 = arith.cmpi eq, %3, %6 : vector<8x128xi32>
    %c128_i32 = arith.constant 128 : i32
    %8 = arith.muli %arg1, %c128_i32 : i32
    %9 = vector.broadcast %8 : i32 to vector<8x128xi32>
    %10 = arith.addi %3, %9 : vector<8x128xi32>
    %c16_i32 = arith.constant 16 : i32
    %11 = vector.broadcast %c16_i32 : i32 to vector<8x128xi32>
    %12 = arith.cmpi slt, %10, %11 : vector<8x128xi32>
    %c0 = arith.constant 0 : index
    %c0_2 = arith.constant 0 : index
    %13 = vector.load %arg4[%c0, %c0_2] : memref<8x1xf32, #tpu.memory_space<vmem>>, vector<8x1xf32>
    %c0_3 = arith.constant 0 : index
    %c0_4 = arith.constant 0 : index
    %14 = vector.load %arg5[%c0_3, %c0_4] : memref<8x1xf32, #tpu.memory_space<vmem>>, vector<8x1xf32>
    %c0_5 = arith.constant 0 : index
    %c0_6 = arith.constant 0 : index
    %15 = vector.load %arg7[%c0_5, %c0_6] : memref<8x1xf32, #tpu.memory_space<vmem>>, vector<8x1xf32>
    %cst = arith.constant 0.000000e+00 : f32
    %16 = vector.broadcast %cst : f32 to vector<8x1xf32>
    %cst_7 = arith.constant 0.000000e+00 : f32
    %17 = vector.broadcast %cst_7 : f32 to vector<8x1xf32>
    %c0_8 = arith.constant 0 : index
    %c0_9 = arith.constant 0 : index
    %c0_10 = arith.constant 0 : index
    %18 = vector.load %arg2[%c0_8, %c0_9, %c0_10] : memref<1x8x128xf32, #tpu.memory_space<vmem>>, vector<1x8x128xf32>
    %19 = vector.shape_cast %18 : vector<1x8x128xf32> to vector<8x128xf32>
    %20 = vector.broadcast %13 : vector<8x1xf32> to vector<8x128xf32>
    %21 = arith.mulf %20, %19 : vector<8x128xf32>
    %22 = vector.broadcast %14 : vector<8x1xf32> to vector<8x128xf32>
    %23 = arith.addf %21, %22 : vector<8x128xf32>
    %cst_11 = arith.constant 0.000000e+00 : f32
    %24 = vector.broadcast %cst_11 : f32 to vector<8x128xf32>
    %25 = arith.maximumf %23, %24 : vector<8x128xf32>
    %cst_12 = arith.constant 0.000000e+00 : f32
    %26 = vector.broadcast %cst_12 : f32 to vector<8x128xf32>
    %27 = arith.select %12, %25, %26 : vector<8x128xi1>, vector<8x128xf32>
    %c0_13 = arith.constant 0 : index
    %c0_14 = arith.constant 0 : index
    %c0_15 = arith.constant 0 : index
    %c0_16 = arith.constant 0 : index
    %28 = vector.load %arg3[%c0_13, %c0_14, %c0_15, %c0_16] : memref<1x1x8x2xf32, #tpu.memory_space<vmem>>, vector<1x1x8x2xf32>
    %29 = vector.shape_cast %28 : vector<1x1x8x2xf32> to vector<8x2xf32>
    %30 = vector.extract_strided_slice %29 {offsets = [0, 0], sizes = [8, 1], strides = [1, 1]} : vector<8x2xf32> to vector<8x1xf32>
    %31 = vector.shape_cast %30 : vector<8x1xf32> to vector<8x1xf32>
    %32 = vector.broadcast %31 : vector<8x1xf32> to vector<8x128xf32>
    %c1_i32 = arith.constant 1 : i32
    %33 = tpu.dynamic_rotate %27 by %c1_i32 dim 1 : vector<8x128xf32>, i32 -> vector<8x128xf32>
    %34 = arith.select %5, %32, %33 : vector<8x128xi1>, vector<8x128xf32>
    %35 = vector.extract_strided_slice %29 {offsets = [0, 1], sizes = [8, 1], strides = [1, 1]} : vector<8x2xf32> to vector<8x1xf32>
    %36 = vector.shape_cast %35 : vector<8x1xf32> to vector<8x1xf32>
    %37 = vector.broadcast %36 : vector<8x1xf32> to vector<8x128xf32>
    %c127_i32_17 = arith.constant 127 : i32
    %38 = tpu.dynamic_rotate %27 by %c127_i32_17 dim 1 : vector<8x128xf32>, i32 -> vector<8x128xf32>
    %39 = arith.select %7, %37, %38 : vector<8x128xi1>, vector<8x128xf32>
    %40 = tpu.concatenate %34, %27, %39 in 0 : vector<8x128xf32>, vector<8x128xf32>, vector<8x128xf32> -> vector<24x128xf32>
    %c0_18 = arith.constant 0 : index
    %c0_19 = arith.constant 0 : index
    %41 = vector.load %arg6[%c0_18, %c0_19] : memref<8x24xf32, #tpu.memory_space<vmem>>, vector<8x24xf32>
    %cst_20 = arith.constant dense<0.000000e+00> : vector<8x128xf32>
    %42 = tpu.matmul %41, %40, %cst_20 {dimension_numbers = #tpu.dot_dimension_numbers<[1], [0], [0], [1], [0, 0, 1, 1], [], []>} : vector<8x24xf32>, vector<24x128xf32>, vector<8x128xf32> -> vector<8x128xf32>
    %cst_21 = arith.constant 0.000000e+00 : f32
    %43 = vector.broadcast %cst_21 : f32 to vector<8x128xf32>
    %44 = arith.select %12, %42, %43 : vector<8x128xi1>, vector<8x128xf32>
    %cst_22 = arith.constant dense<0.000000e+00> : vector<8xf32>
    %45 = vector.multi_reduction <add>, %44, %cst_22 [1] : vector<8x128xf32> to vector<8xf32>
    %46 = vector.shape_cast %45 : vector<8xf32> to vector<8x1xf32>
    %47 = arith.addf %16, %46 : vector<8x1xf32>
    %48 = arith.mulf %44, %44 : vector<8x128xf32>
    %cst_23 = arith.constant dense<0.000000e+00> : vector<8xf32>
    %49 = vector.multi_reduction <add>, %48, %cst_23 [1] : vector<8x128xf32> to vector<8xf32>
    %50 = vector.shape_cast %49 : vector<8xf32> to vector<8x1xf32>
    %51 = arith.addf %17, %50 : vector<8x1xf32>
    %52 = vector.broadcast %15 : vector<8x1xf32> to vector<8x128xf32>
    %53 = arith.addf %42, %52 : vector<8x128xf32>
    %c0_24 = arith.constant 0 : index
    %c0_25 = arith.constant 0 : index
    %c0_26 = arith.constant 0 : index
    %54 = vector.load %arg8[%c0_24, %c0_25, %c0_26] : memref<1x8x128xf32, #tpu.memory_space<vmem>>, vector<1x8x128xf32>
    %55 = vector.shape_cast %54 : vector<1x8x128xf32> to vector<8x128xf32>
    %56 = vector.shape_cast %53 : vector<8x128xf32> to vector<1x8x128xf32>
    tpu.vector_store %arg8[%c0_24, %c0_25, %c0_26], %56 {strides = array<i32>} : memref<1x8x128xf32, #tpu.memory_space<vmem>>, vector<1x8x128xf32>,
    %c0_27 = arith.constant 0 : index
    %c0_28 = arith.constant 0 : index
    %57 = vector.load %arg10[%c0_27, %c0_28] : memref<8x1xf32, #tpu.memory_space<vmem>>, vector<8x1xf32>
    %58 = arith.addf %57, %47 : vector<8x1xf32>
    %c0_29 = arith.constant 0 : index
    %c0_30 = arith.constant 0 : index
    %59 = vector.load %arg10[%c0_29, %c0_30] : memref<8x1xf32, #tpu.memory_space<vmem>>, vector<8x1xf32>
    tpu.vector_store %arg10[%c0_29, %c0_30], %58 {strides = array<i32>} : memref<8x1xf32, #tpu.memory_space<vmem>>, vector<8x1xf32>,
    %c0_31 = arith.constant 0 : index
    %c0_32 = arith.constant 0 : index
    %60 = vector.load %arg11[%c0_31, %c0_32] : memref<8x1xf32, #tpu.memory_space<vmem>>, vector<8x1xf32>
    %61 = arith.addf %60, %51 : vector<8x1xf32>
    %c0_33 = arith.constant 0 : index
    %c0_34 = arith.constant 0 : index
    %62 = vector.load %arg11[%c0_33, %c0_34] : memref<8x1xf32, #tpu.memory_space<vmem>>, vector<8x1xf32>
    tpu.vector_store %arg11[%c0_33, %c0_34], %61 {strides = array<i32>} : memref<8x1xf32, #tpu.memory_space<vmem>>, vector<8x1xf32>,
    %c0_i32_35 = arith.constant 0 : i32
    %63 = arith.cmpi eq, %arg1, %c0_i32_35 : i32
    %64 = arith.extui %63 : i1 to i32
    %c0_i32_36 = arith.constant 0 : i32
    %65 = arith.cmpi ne, %64, %c0_i32_36 : i32
    scf.if %65 {
      %c0_37 = arith.constant 0 : index
      %c0_38 = arith.constant 0 : index
      %66 = vector.load %arg10[%c0_37, %c0_38] : memref<8x1xf32, #tpu.memory_space<vmem>>, vector<8x1xf32>
      %c0_39 = arith.constant 0 : index
      %c0_40 = arith.constant 0 : index
      %c0_41 = arith.constant 0 : index
      %67 = vector.load %arg9[%c0_39, %c0_40, %c0_41] : memref<1x8x2xf32, #tpu.memory_space<vmem>>, vector<1x8x1xf32>
      %68 = vector.shape_cast %67 : vector<1x8x1xf32> to vector<8x1xf32>
      %69 = vector.shape_cast %66 : vector<8x1xf32> to vector<1x8x1xf32>
      tpu.vector_store %arg9[%c0_39, %c0_40, %c0_41], %69 {strides = array<i32>} : memref<1x8x2xf32, #tpu.memory_space<vmem>>, vector<1x8x1xf32>,
      %c0_42 = arith.constant 0 : index
      %c0_43 = arith.constant 0 : index
      %70 = vector.load %arg11[%c0_42, %c0_43] : memref<8x1xf32, #tpu.memory_space<vmem>>, vector<8x1xf32>
      %c0_44 = arith.constant 0 : index
      %c0_45 = arith.constant 0 : index
      %c1 = arith.constant 1 : index
      %71 = vector.load %arg9[%c0_44, %c0_45, %c1] : memref<1x8x2xf32, #tpu.memory_space<vmem>>, vector<1x8x1xf32>
      %72 = vector.shape_cast %71 : vector<1x8x1xf32> to vector<8x1xf32>
      %73 = vector.shape_cast %70 : vector<8x1xf32> to vector<1x8x1xf32>
      tpu.vector_store %arg9[%c0_44, %c0_45, %c1], %73 {strides = array<i32>} : memref<1x8x2xf32, #tpu.memory_space<vmem>>, vector<1x8x1xf32>,
    } else {
    }
    return
  }
  func.func @transform_0(%arg0: i32, %arg1: i32) -> (i32, i32, i32) {
    %c0_i32 = arith.constant 0 : i32
    %c0_i32_0 = arith.constant 0 : i32
    return %arg0, %c0_i32, %arg1 : i32, i32, i32
  }
  func.func @transform_1(%arg0: i32, %arg1: i32) -> (i32, i32, i32, i32) {
    %c0_i32 = arith.constant 0 : i32
    %c0_i32_0 = arith.constant 0 : i32
    %c0_i32_1 = arith.constant 0 : i32
    return %arg0, %arg1, %c0_i32, %c0_i32_0 : i32, i32, i32, i32
  }
  func.func @transform_2(%arg0: i32, %arg1: i32) -> (i32, i32) {
    %c0_i32 = arith.constant 0 : i32
    %c0_i32_0 = arith.constant 0 : i32
    %c0_i32_1 = arith.constant 0 : i32
    return %c0_i32, %c0_i32_0 : i32, i32
  }
  func.func @transform_3(%arg0: i32, %arg1: i32) -> (i32, i32) {
    %c0_i32 = arith.constant 0 : i32
    %c0_i32_0 = arith.constant 0 : i32
    %c0_i32_1 = arith.constant 0 : i32
    return %c0_i32, %c0_i32_0 : i32, i32
  }
  func.func @transform_4(%arg0: i32, %arg1: i32) -> (i32, i32) {
    %c0_i32 = arith.constant 0 : i32
    %c0_i32_0 = arith.constant 0 : i32
    %c0_i32_1 = arith.constant 0 : i32
    return %c0_i32, %c0_i32_0 : i32, i32
  }
  func.func @transform_5(%arg0: i32, %arg1: i32) -> (i32, i32) {
    %c0_i32 = arith.constant 0 : i32
    %c0_i32_0 = arith.constant 0 : i32
    %c0_i32_1 = arith.constant 0 : i32
    return %c0_i32, %c0_i32_0 : i32, i32
  }
  func.func @transform_6(%arg0: i32, %arg1: i32) -> (i32, i32, i32) {
    %c0_i32 = arith.constant 0 : i32
    %c0_i32_0 = arith.constant 0 : i32
    return %arg0, %c0_i32, %arg1 : i32, i32, i32
  }
  func.func @transform_7(%arg0: i32, %arg1: i32) -> (i32, i32, i32) {
    %c0_i32 = arith.constant 0 : i32
    %c0_i32_0 = arith.constant 0 : i32
    %c0_i32_1 = arith.constant 0 : i32
    return %arg0, %c0_i32, %c0_i32_0 : i32, i32, i32
  }
}

</mosaic_0001>

<llo_original>
// kernel: convblock1d_forward.5
$region0: #{convblock1d_forward.5}
  #allocation0 [shape = 'u32[]', space=smem, size = 0x4, offset = 0x4, fixed_abs, tag = 'smem constant byte address 0x4 - core index']
  #allocation1 [shape = 'u32[72,128]{1,0:T(1,128)}', space=vmem, size = 0x9000, scoped, tag = 'internal scratch']
  %s0 = inlined_call_operand.vmem [shape: f32[2,8,128], index: 0, kind: input, shape index: {}]
  %s1 = inlined_call_operand.vmem [shape: f32[8,1], index: 1, kind: input, shape index: {}]
  %s2 = inlined_call_operand.vmem [shape: f32[8,1], index: 2, kind: input, shape index: {}]
  %s3 = inlined_call_operand.hbm [shape: f32[2,8,128], index: 3, kind: output, shape index: {}]
  %s4 = sld [smem:[#allocation0]]
  $region45: #{convblock1d_forward.5} parent=0
    _
  %s6 = ssub.s32 1, %s4
  %s7 = scalar_select 0, %s6, %s4
  $region1: #{convblock1d_forward.5} parent=0
    #allocation2 [shape = 'u8[8192]{0}', space=vmem, size = 0x2000, scoped, tag = 'output window, operand 0']
    #allocation3 [shape = 's32[2]{0}', space=sflag, size = 0x8, scoped, tag = 'scoped memory for convblock1d_forward.5']
    %8 = vsyncpa [#allocation3], 0
    %s9 = scalar_lea.sflag [#allocation3], 1
    %10 = vsyncpa %s9, 0
    loop: start=0, step=1, limit=4
    $region2: #{convblock1d_forward.5} parent=1 // loop_pre_header
      _
    $region3: #{convblock1d_forward.5} parent=1 // loop_header
      %s12 = sphi 0, %s16
      %p13 = scmp.ge.s32.totalorder %s12, 4
      %s19 = sphi 0, %s31
      %s20 = sphi 0, %s27
      %s21 = sphi 0, %s19
      %s22 = sphi 0, %s20
      %s23 = sphi 0, %s21
      %s24 = sphi 0, %s22
      %s36 = sphi 0, %s38
      %s39 = sphi 0, %s36
      %s40 = sphi 0, %s39
      %s56 = sphi 0, %s40
      %s60 = sphi 0, %s60
      %s62 = sphi 0, %s60
      %s63 = sphi 0, %s62
      %s77 = sphi 0, %s63
      %s81 = sphi 0, %s81
      %s83 = sphi 0, %s81
      %s84 = sphi 0, %s83
      %s98 = sphi 0, %s84
      %s106 = sphi 0, %s108
      %s109 = sphi 0, %s106
      %s110 = sphi 0, %s109
      %s126 = sphi 0, %s110
    $region4: #{convblock1d_forward.5} parent=1 // loop_header_branch
      %15 = sbr.rel (%p13) target = $region8
    $region5: #{convblock1d_forward.5} parent=1 // loop_body
      %s17 = ssub.s32 %s12, 1
      %s18 = ssub.s32 %s12, 2
      %s25 = sadd.s32 1, %s20
      %p26 = scmp.ge.s32.totalorder %s25, 1
      %s27 = scalar_select %p26, 0, %s25
      %s28 = sadd.s32 1, %s19
      %s29 = scalar_select %p26, %s28, %s19
      %p30 = scmp.ge.s32.totalorder %s29, 2
      %s31 = scalar_select %p30, 0, %s29
      %s32 = ssub.s32 %s19, %s31
      %s33 = ssub.s32 %s20, %s27
      %s34 = sor.u32 %s32, %s33
      %p35 = scmp.eq.s32.totalorder %s34, 0
      %s37 = sadd.s32 %s36, 1
      %s38 = scalar_select %p35, %s36, %s37
      %p41 = pneg %p35
      %p42 = scmp.eq.s32.totalorder %s12, 1
      %p43 = por %p41, %p42
      %p44 = scmp.ne.s32.totalorder %s36, %s39
      %p45 = scmp.eq.s32.totalorder %s12, 0
      %p46 = por %p44, %p45
      %p47 = scmp.ne.s32.totalorder %s36, %s39
      %p48 = scmp.eq.s32.totalorder %s17, 1
      %p49 = por %p47, %p48
      %p50 = scmp.ne.s32.totalorder %s39, %s40
      %p51 = scmp.eq.s32.totalorder %s17, 0
      %p52 = por %p50, %p51
      %p53 = scmp.ne.s32.totalorder %s39, %s40
      %p54 = scmp.eq.s32.totalorder %s18, 1
      %p55 = por %p53, %p54
      %p57 = scmp.ne.s32.totalorder %s40, %s56
      %p58 = scmp.eq.s32.totalorder %s18, 0
      %p59 = por %p57, %p58
      %s61 = sadd.s32 %s60, 1
      %p64 = scmp.eq.s32.totalorder %s12, 1
      %p65 = scmp.ne.s32.totalorder %s60, %s62
      %p66 = scmp.eq.s32.totalorder %s12, 0
      %p67 = por %p65, %p66
      %p68 = scmp.ne.s32.totalorder %s60, %s62
      %p69 = scmp.eq.s32.totalorder %s17, 1
      %p70 = por %p68, %p69
      %p71 = scmp.ne.s32.totalorder %s62, %s63
      %p72 = scmp.eq.s32.totalorder %s17, 0
      %p73 = por %p71, %p72
      %p74 = scmp.ne.s32.totalorder %s62, %s63
      %p75 = scmp.eq.s32.totalorder %s18, 1
      %p76 = por %p74, %p75
      %p78 = scmp.ne.s32.totalorder %s63, %s77
      %p79 = scmp.eq.s32.totalorder %s18, 0
      %p80 = por %p78, %p79
      %s82 = sadd.s32 %s81, 1
      %p85 = scmp.eq.s32.totalorder %s12, 1
      %p86 = scmp.ne.s32.totalorder %s81, %s83
      %p87 = scmp.eq.s32.totalorder %s12, 0
      %p88 = por %p86, %p87
      %p89 = scmp.ne.s32.totalorder %s81, %s83
      %p90 = scmp.eq.s32.totalorder %s17, 1
      %p91 = por %p89, %p90
      %p92 = scmp.ne.s32.totalorder %s83, %s84
      %p93 = scmp.eq.s32.totalorder %s17, 0
      %p94 = por %p92, %p93
      %p95 = scmp.ne.s32.totalorder %s83, %s84
      %p96 = scmp.eq.s32.totalorder %s18, 1
      %p97 = por %p95, %p96
      %p99 = scmp.ne.s32.totalorder %s84, %s98
      %p100 = scmp.eq.s32.totalorder %s18, 0
      %p101 = por %p99, %p100
      %s102 = ssub.s32 %s19, %s31
      %s103 = ssub.s32 %s20, %s27
      %s104 = sor.u32 %s102, %s103
      %p105 = scmp.eq.s32.totalorder %s104, 0
      %s107 = sadd.s32 %s106, 1
      %s108 = scalar_select %p105, %s106, %s107
      %p111 = pneg %p105
      %p112 = scmp.eq.s32.totalorder %s12, 1
      %p113 = por %p111, %p112
      %p114 = scmp.ne.s32.totalorder %s106, %s109
      %p115 = scmp.eq.s32.totalorder %s12, 0
      %p116 = por %p114, %p115
      %p117 = scmp.ne.s32.totalorder %s106, %s109
      %p118 = scmp.eq.s32.totalorder %s17, 1
      %p119 = por %p117, %p118
      %p120 = scmp.ne.s32.totalorder %s109, %s110
      %p121 = scmp.eq.s32.totalorder %s17, 0
      %p122 = por %p120, %p121
      %p123 = scmp.ne.s32.totalorder %s109, %s110
      %p124 = scmp.eq.s32.totalorder %s18, 1
      %p125 = por %p123, %p124
      %p127 = scmp.ne.s32.totalorder %s110, %s126
      %p128 = scmp.eq.s32.totalorder %s18, 0
      %p129 = por %p127, %p128
      %p130 = scmp.le.s32.totalorder 1, %s12
      %p131 = scmp.lt.s32.totalorder %s12, 3
      %p132 = pnand %p130, %p131
      %p133 = pneg %p132
      // Predicated region
      $region9: #{convblock1d_forward.5} parent=5 // pred_check
        _
      $region10: #{convblock1d_forward.5} parent=5 // pred_check_branch
        %135 = sbr.rel (%p132) target = $region12
      $region11: #{convblock1d_forward.5} parent=5 // pred_region
        %s136 = ssub.s32 %s12, 1
        // Predicated region
        $region13: #{convblock1d_forward.5} parent=11 // pred_check
          %p137 = pneg %p73
        $region14: #{convblock1d_forward.5} parent=11 // pred_check_branch
          %139 = sbr.rel (%p137) target = $region16
        $region15: #{convblock1d_forward.5} parent=11 // pred_region
          _
        $region16: #{convblock1d_forward.5} parent=11 // pred_fallthru
          _
        // Predicated region
        $region17: #{convblock1d_forward.5} parent=11 // pred_check
          %p140 = pneg %p94
        $region18: #{convblock1d_forward.5} parent=11 // pred_check_branch
          %142 = sbr.rel (%p140) target = $region20
        $region19: #{convblock1d_forward.5} parent=11 // pred_region
          _
        $region20: #{convblock1d_forward.5} parent=11 // pred_fallthru
          _
      $region12: #{convblock1d_forward.5} parent=5 // pred_fallthru
        _
      %p143 = scmp.lt.s32.totalorder %s12, 2
      // Predicated region
      $region21: #{convblock1d_forward.5} parent=5 // pred_check
        %p144 = pneg %p143
      $region22: #{convblock1d_forward.5} parent=5 // pred_check_branch
        %146 = sbr.rel (%p144) target = $region24
      $region23: #{convblock1d_forward.5} parent=5 // pred_region
        // Predicated region
        $region25: #{convblock1d_forward.5} parent=23 // pred_check
          %p147 = pneg %p46
        $region26: #{convblock1d_forward.5} parent=23 // pred_check_branch
          %149 = sbr.rel (%p147) target = $region28
        $region27: #{convblock1d_forward.5} parent=23 // pred_region
          %p150 = scmp.lt.s32.totalorder %s19, 1
          %s151 = scalar_select %p150, %s19, 1
          %p152 = scmp.lt.s32.totalorder %s20, 0
          %s153 = scalar_select %p152, %s20, 0
          %s154 = sadd.s32 %s153, %s151
          %s155 = smul.addr %s154, 8
          %s156 = scalar_lea.vmem %s0, %s155
        $region28: #{convblock1d_forward.5} parent=23 // pred_fallthru
          _
      $region24: #{convblock1d_forward.5} parent=5 // pred_fallthru
        _
      %p157 = scmp.le.s32.totalorder 1, %s12
      %p158 = scmp.lt.s32.totalorder %s12, 3
      %p159 = pnand %p157, %p158
      %p160 = pneg %p159
      // Predicated region
      $region29: #{convblock1d_forward.5} parent=5 // pred_check
        _
      $region30: #{convblock1d_forward.5} parent=5 // pred_check_branch
        %162 = sbr.rel (%p159) target = $region32
      $region31: #{convblock1d_forward.5} parent=5 // pred_region
        %s163 = ssub.s32 %s12, 1
        %p164 = scmp.lt.s32.totalorder %s21, 1
        %s165 = scalar_select %p164, %s21, 1
        %p166 = scmp.lt.s32.totalorder %s22, 0
        %s167 = scalar_select %p166, %s22, 0
        %s168 = sadd.s32 %s167, %s165
        %s169 = smul.addr %s168, 8
        %s170 = scalar_lea.vmem %s0, %s169
        %p171 = pneg %p52
        %p172 = pneg %p49
        %p173 = pneg %p73
        %p174 = pneg %p70
        %p175 = pneg %p94
        %p176 = pneg %p91
        %p177 = pneg %p122
        %p178 = pneg %p119
        %s179 = sand.u32 %s109, 1
        %s180 = scalar_lea.sflag [#allocation3], %s179
        %s181 = sand.u32 %s109, 1
        %s182 = smul.addr %s181, 8
        %s183 = scalar_lea.vmem [#allocation2], %s182
        %p184 = scmp.lt.s32.totalorder %s21, 1
        %s185 = scalar_select %p184, %s21, 1
        %p186 = scmp.lt.s32.totalorder %s22, 0
        %s187 = scalar_select %p186, %s22, 0
        %s188 = sadd.s32 %s187, %s185
        %s189 = smul.addr %s188, 8
        %s190 = scalar_lea.vmem %s0, %s189
        %v191 = vld [vmem:[%s1] sm:$0xff]
        %v192 = vld [vmem:[%s2] sm:$0xff]
        %v193 = vld [vmem:[%s190] sm:$0xff]
        %195 = vset.pattern.permute.xlu0 0
        %196 = vperm.xlu0 %195, %v191
        %v197 = vpop.permute.xlu0 %196
        %v199 = vmul.f32 %v193, %v197
        %201 = vset.pattern.permute.xlu0 0
        %202 = vperm.xlu0 %201, %v192
        %v203 = vpop.permute.xlu0 %202
        %v205 = vadd.f32 %v199, %v203
        %v206 = vmax.f32 %v205, 0.0
        %207 = vst [vmem:[%s183] sm:$0xff] %v206
        %s208 = sand.u32 %s109, 1
        %s209 = scalar_lea.sflag [#allocation3], %s208
        %s210 = sand.u32 %s109, 1
        %s211 = smul.addr %s210, 8
        %s212 = scalar_lea.vmem [#allocation2], %s211
        // Predicated region
        $region33: #{convblock1d_forward.5} parent=31 // pred_check
          %p213 = pneg %p119
        $region34: #{convblock1d_forward.5} parent=31 // pred_check_branch
          %215 = sbr.rel (%p213) target = $region36
        $region35: #{convblock1d_forward.5} parent=31 // pred_region
          %217 = vsyncadd %s209, 0
          %s218 = sadd.s32 %s22, %s21
          %s219 = smul.addr %s218, 8
          %s220 = scalar_lea.hbm %s3, %s219
          %s222 = sshll.u32 %s212, 4
          %s223 = int_to_ptr.vmem [resolvable:$true] %s222
          %s224 = sshll.u32 %s220, 4
          %s225 = int_to_ptr.hbm [resolvable:$true] %s224
          %227 = dma.vmem_to_hbm [thread:$0]  %s223, 128, %s225, %s209
        $region36: #{convblock1d_forward.5} parent=31 // pred_fallthru
          _
      $region32: #{convblock1d_forward.5} parent=5 // pred_fallthru
        _
      %p228 = scmp.le.s32.totalorder 2, %s12
      // Predicated region
      $region37: #{convblock1d_forward.5} parent=5 // pred_check
        %p229 = pneg %p228
      $region38: #{convblock1d_forward.5} parent=5 // pred_check_branch
        %231 = sbr.rel (%p229) target = $region40
      $region39: #{convblock1d_forward.5} parent=5 // pred_region
        %s232 = ssub.s32 %s12, 2
        // Predicated region
        $region41: #{convblock1d_forward.5} parent=39 // pred_check
          %p233 = pneg %p125
        $region42: #{convblock1d_forward.5} parent=39 // pred_check_branch
          %235 = sbr.rel (%p233) target = $region44
        $region43: #{convblock1d_forward.5} parent=39 // pred_region
          %s236 = sand.u32 %s110, 1
          %s237 = scalar_lea.sflag [#allocation3], %s236
          %s238 = sand.u32 %s110, 1
          %s239 = smul.addr %s238, 8
          %s240 = scalar_lea.vmem [#allocation2], %s239
          %242 = dma.done %s237, 128
        $region44: #{convblock1d_forward.5} parent=39 // pred_fallthru
          _
      $region40: #{convblock1d_forward.5} parent=5 // pred_fallthru
        _
    $region6: #{convblock1d_forward.5} parent=1 // loop_footer
      %s16 = sadd.s32 1, %s12
    $region7: #{convblock1d_forward.5} parent=1 // loop_footer_branch
      %11 = sbr.rel target = $region3
    $region8: #{convblock1d_forward.5} parent=1 // loop_exit
      _
    %243 = vsyncpa [#allocation3], 1
    %s244 = scalar_lea.sflag [#allocation3], 1
    %245 = vsyncpa %s244, 1

// kernel: convblock1d_forward.4
$region0: #{convblock1d_forward.4}
  #allocation0 [shape = 'u32[]', space=smem, size = 0x4, offset = 0x4, fixed_abs, tag = 'smem constant byte address 0x4 - core index']
  #allocation1 [shape = 'u32[72,128]{1,0:T(1,128)}', space=vmem, size = 0x9000, scoped, tag = 'internal scratch']
  #allocation2 [shape = 'f32[8,1]{1,0:T(8,128)}', space=vmem, size = 0x1000, scoped, tag = 'scratch operand']
  #allocation3 [shape = 'f32[8,1]{1,0:T(8,128)}', space=vmem, size = 0x1000, scoped, tag = 'scratch operand']
  %s0 = inlined_call_operand.vmem [shape: f32[2,8,128], index: 0, kind: input, shape index: {}]
  %s1 = inlined_call_operand.vmem [shape: f32[2,1,8,2], index: 1, kind: input, shape index: {}]
  %s2 = inlined_call_operand.vmem [shape: f32[8,1], index: 2, kind: input, shape index: {}]
  %s3 = inlined_call_operand.vmem [shape: f32[8,1], index: 3, kind: input, shape index: {}]
  %s4 = inlined_call_operand.vmem [shape: f32[8,24], index: 4, kind: input, shape index: {}]
  %s5 = inlined_call_operand.vmem [shape: f32[8,1], index: 5, kind: input, shape index: {}]
  %s6 = inlined_call_operand.vmem [shape: f32[2,8,128], index: 6, kind: output, shape index: {0}]
  %s7 = inlined_call_operand.vmem [shape: f32[2,8,2], index: 7, kind: output, shape index: {1}]
  %8 = xla_tuple %s6, %s7
  %s9 = sld [smem:[#allocation0]]
  $region73: #{convblock1d_forward.4} parent=0
    _
  %s11 = ssub.s32 1, %s9
  %s12 = scalar_select 0, %s11, %s9
  loop: start=0, step=1, limit=4
  $region2: #{convblock1d_forward.4} parent=0 // loop_pre_header
    _
  $region3: #{convblock1d_forward.4} parent=0 // loop_header
    %s14 = sphi 0, %s18
    %p15 = scmp.ge.s32.totalorder %s14, 4
    %s21 = sphi 0, %s33
    %s22 = sphi 0, %s29
    %s23 = sphi 0, %s21
    %s24 = sphi 0, %s22
    %s25 = sphi 0, %s23
    %s26 = sphi 0, %s24
    %s38 = sphi 0, %s40
    %s41 = sphi 0, %s38
    %s42 = sphi 0, %s41
    %s58 = sphi 0, %s42
    %s66 = sphi 0, %s68
    %s69 = sphi 0, %s66
    %s70 = sphi 0, %s69
    %s86 = sphi 0, %s70
    %s90 = sphi 0, %s90
    %s92 = sphi 0, %s90
    %s93 = sphi 0, %s92
    %s107 = sphi 0, %s93
    %s111 = sphi 0, %s111
    %s113 = sphi 0, %s111
    %s114 = sphi 0, %s113
    %s128 = sphi 0, %s114
    %s132 = sphi 0, %s132
    %s134 = sphi 0, %s132
    %s135 = sphi 0, %s134
    %s149 = sphi 0, %s135
    %s153 = sphi 0, %s153
    %s155 = sphi 0, %s153
    %s156 = sphi 0, %s155
    %s170 = sphi 0, %s156
    %s178 = sphi 0, %s180
    %s181 = sphi 0, %s178
    %s182 = sphi 0, %s181
    %s198 = sphi 0, %s182
    %s204 = sphi 0, %s206
    %s207 = sphi 0, %s204
    %s208 = sphi 0, %s207
    %s224 = sphi 0, %s208
  $region4: #{convblock1d_forward.4} parent=0 // loop_header_branch
    %17 = sbr.rel (%p15) target = $region8
  $region5: #{convblock1d_forward.4} parent=0 // loop_body
    %s19 = ssub.s32 %s14, 1
    %s20 = ssub.s32 %s14, 2
    %s27 = sadd.s32 1, %s22
    %p28 = scmp.ge.s32.totalorder %s27, 1
    %s29 = scalar_select %p28, 0, %s27
    %s30 = sadd.s32 1, %s21
    %s31 = scalar_select %p28, %s30, %s21
    %p32 = scmp.ge.s32.totalorder %s31, 2
    %s33 = scalar_select %p32, 0, %s31
    %s34 = ssub.s32 %s21, %s33
    %s35 = ssub.s32 %s22, %s29
    %s36 = sor.u32 %s34, %s35
    %p37 = scmp.eq.s32.totalorder %s36, 0
    %s39 = sadd.s32 %s38, 1
    %s40 = scalar_select %p37, %s38, %s39
    %p43 = pneg %p37
    %p44 = scmp.eq.s32.totalorder %s14, 1
    %p45 = por %p43, %p44
    %p46 = scmp.ne.s32.totalorder %s38, %s41
    %p47 = scmp.eq.s32.totalorder %s14, 0
    %p48 = por %p46, %p47
    %p49 = scmp.ne.s32.totalorder %s38, %s41
    %p50 = scmp.eq.s32.totalorder %s19, 1
    %p51 = por %p49, %p50
    %p52 = scmp.ne.s32.totalorder %s41, %s42
    %p53 = scmp.eq.s32.totalorder %s19, 0
    %p54 = por %p52, %p53
    %p55 = scmp.ne.s32.totalorder %s41, %s42
    %p56 = scmp.eq.s32.totalorder %s20, 1
    %p57 = por %p55, %p56
    %p59 = scmp.ne.s32.totalorder %s42, %s58
    %p60 = scmp.eq.s32.totalorder %s20, 0
    %p61 = por %p59, %p60
    %s62 = ssub.s32 %s21, %s33
    %s63 = ssub.s32 %s22, %s29
    %s64 = sor.u32 %s62, %s63
    %p65 = scmp.eq.s32.totalorder %s64, 0
    %s67 = sadd.s32 %s66, 1
    %s68 = scalar_select %p65, %s66, %s67
    %p71 = pneg %p65
    %p72 = scmp.eq.s32.totalorder %s14, 1
    %p73 = por %p71, %p72
    %p74 = scmp.ne.s32.totalorder %s66, %s69
    %p75 = scmp.eq.s32.totalorder %s14, 0
    %p76 = por %p74, %p75
    %p77 = scmp.ne.s32.totalorder %s66, %s69
    %p78 = scmp.eq.s32.totalorder %s19, 1
    %p79 = por %p77, %p78
    %p80 = scmp.ne.s32.totalorder %s69, %s70
    %p81 = scmp.eq.s32.totalorder %s19, 0
    %p82 = por %p80, %p81
    %p83 = scmp.ne.s32.totalorder %s69, %s70
    %p84 = scmp.eq.s32.totalorder %s20, 1
    %p85 = por %p83, %p84
    %p87 = scmp.ne.s32.totalorder %s70, %s86
    %p88 = scmp.eq.s32.totalorder %s20, 0
    %p89 = por %p87, %p88
    %s91 = sadd.s32 %s90, 1
    %p94 = scmp.eq.s32.totalorder %s14, 1
    %p95 = scmp.ne.s32.totalorder %s90, %s92
    %p96 = scmp.eq.s32.totalorder %s14, 0
    %p97 = por %p95, %p96
    %p98 = scmp.ne.s32.totalorder %s90, %s92
    %p99 = scmp.eq.s32.totalorder %s19, 1
    %p100 = por %p98, %p99
    %p101 = scmp.ne.s32.totalorder %s92, %s93
    %p102 = scmp.eq.s32.totalorder %s19, 0
    %p103 = por %p101, %p102
    %p104 = scmp.ne.s32.totalorder %s92, %s93
    %p105 = scmp.eq.s32.totalorder %s20, 1
    %p106 = por %p104, %p105
    %p108 = scmp.ne.s32.totalorder %s93, %s107
    %p109 = scmp.eq.s32.totalorder %s20, 0
    %p110 = por %p108, %p109
    %s112 = sadd.s32 %s111, 1
    %p115 = scmp.eq.s32.totalorder %s14, 1
    %p116 = scmp.ne.s32.totalorder %s111, %s113
    %p117 = scmp.eq.s32.totalorder %s14, 0
    %p118 = por %p116, %p117
    %p119 = scmp.ne.s32.totalorder %s111, %s113
    %p120 = scmp.eq.s32.totalorder %s19, 1
    %p121 = por %p119, %p120
    %p122 = scmp.ne.s32.totalorder %s113, %s114
    %p123 = scmp.eq.s32.totalorder %s19, 0
    %p124 = por %p122, %p123
    %p125 = scmp.ne.s32.totalorder %s113, %s114
    %p126 = scmp.eq.s32.totalorder %s20, 1
    %p127 = por %p125, %p126
    %p129 = scmp.ne.s32.totalorder %s114, %s128
    %p130 = scmp.eq.s32.totalorder %s20, 0
    %p131 = por %p129, %p130
    %s133 = sadd.s32 %s132, 1
    %p136 = scmp.eq.s32.totalorder %s14, 1
    %p137 = scmp.ne.s32.totalorder %s132, %s134
    %p138 = scmp.eq.s32.totalorder %s14, 0
    %p139 = por %p137, %p138
    %p140 = scmp.ne.s32.totalorder %s132, %s134
    %p141 = scmp.eq.s32.totalorder %s19, 1
    %p142 = por %p140, %p141
    %p143 = scmp.ne.s32.totalorder %s134, %s135
    %p144 = scmp.eq.s32.totalorder %s19, 0
    %p145 = por %p143, %p144
    %p146 = scmp.ne.s32.totalorder %s134, %s135
    %p147 = scmp.eq.s32.totalorder %s20, 1
    %p148 = por %p146, %p147
    %p150 = scmp.ne.s32.totalorder %s135, %s149
    %p151 = scmp.eq.s32.totalorder %s20, 0
    %p152 = por %p150, %p151
    %s154 = sadd.s32 %s153, 1
    %p157 = scmp.eq.s32.totalorder %s14, 1
    %p158 = scmp.ne.s32.totalorder %s153, %s155
    %p159 = scmp.eq.s32.totalorder %s14, 0
    %p160 = por %p158, %p159
    %p161 = scmp.ne.s32.totalorder %s153, %s155
    %p162 = scmp.eq.s32.totalorder %s19, 1
    %p163 = por %p161, %p162
    %p164 = scmp.ne.s32.totalorder %s155, %s156
    %p165 = scmp.eq.s32.totalorder %s19, 0
    %p166 = por %p164, %p165
    %p167 = scmp.ne.s32.totalorder %s155, %s156
    %p168 = scmp.eq.s32.totalorder %s20, 1
    %p169 = por %p167, %p168
    %p171 = scmp.ne.s32.totalorder %s156, %s170
    %p172 = scmp.eq.s32.totalorder %s20, 0
    %p173 = por %p171, %p172
    %s174 = ssub.s32 %s21, %s33
    %s175 = ssub.s32 %s22, %s29
    %s176 = sor.u32 %s174, %s175
    %p177 = scmp.eq.s32.totalorder %s176, 0
    %s179 = sadd.s32 %s178, 1
    %s180 = scalar_select %p177, %s178, %s179
    %p183 = pneg %p177
    %p184 = scmp.eq.s32.totalorder %s14, 1
    %p185 = por %p183, %p184
    %p186 = scmp.ne.s32.totalorder %s178, %s181
    %p187 = scmp.eq.s32.totalorder %s14, 0
    %p188 = por %p186, %p187
    %p189 = scmp.ne.s32.totalorder %s178, %s181
    %p190 = scmp.eq.s32.totalorder %s19, 1
    %p191 = por %p189, %p190
    %p192 = scmp.ne.s32.totalorder %s181, %s182
    %p193 = scmp.eq.s32.totalorder %s19, 0
    %p194 = por %p192, %p193
    %p195 = scmp.ne.s32.totalorder %s181, %s182
    %p196 = scmp.eq.s32.totalorder %s20, 1
    %p197 = por %p195, %p196
    %p199 = scmp.ne.s32.totalorder %s182, %s198
    %p200 = scmp.eq.s32.totalorder %s20, 0
    %p201 = por %p199, %p200
    %s202 = ssub.s32 %s21, %s33
    %p203 = scmp.eq.s32.totalorder %s202, 0
    %s205 = sadd.s32 %s204, 1
    %s206 = scalar_select %p203, %s204, %s205
    %p209 = pneg %p203
    %p210 = scmp.eq.s32.totalorder %s14, 1
    %p211 = por %p209, %p210
    %p212 = scmp.ne.s32.totalorder %s204, %s207
    %p213 = scmp.eq.s32.totalorder %s14, 0
    %p214 = por %p212, %p213
    %p215 = scmp.ne.s32.totalorder %s204, %s207
    %p216 = scmp.eq.s32.totalorder %s19, 1
    %p217 = por %p215, %p216
    %p218 = scmp.ne.s32.totalorder %s207, %s208
    %p219 = scmp.eq.s32.totalorder %s19, 0
    %p220 = por %p218, %p219
    %p221 = scmp.ne.s32.totalorder %s207, %s208
    %p222 = scmp.eq.s32.totalorder %s20, 1
    %p223 = por %p221, %p222
    %p225 = scmp.ne.s32.totalorder %s208, %s224
    %p226 = scmp.eq.s32.totalorder %s20, 0
    %p227 = por %p225, %p226
    %p228 = scmp.le.s32.totalorder 1, %s14
    %p229 = scmp.lt.s32.totalorder %s14, 3
    %p230 = pnand %p228, %p229
    %p231 = pneg %p230
    // Predicated region
    $region9: #{convblock1d_forward.4} parent=5 // pred_check
      _
    $region10: #{convblock1d_forward.4} parent=5 // pred_check_branch
      %233 = sbr.rel (%p230) target = $region12
    $region11: #{convblock1d_forward.4} parent=5 // pred_region
      %s234 = ssub.s32 %s14, 1
      // Predicated region
      $region13: #{convblock1d_forward.4} parent=11 // pred_check
        %p235 = pneg %p103
      $region14: #{convblock1d_forward.4} parent=11 // pred_check_branch
        %237 = sbr.rel (%p235) target = $region16
      $region15: #{convblock1d_forward.4} parent=11 // pred_region
        _
      $region16: #{convblock1d_forward.4} parent=11 // pred_fallthru
        _
      // Predicated region
      $region17: #{convblock1d_forward.4} parent=11 // pred_check
        %p238 = pneg %p124
      $region18: #{convblock1d_forward.4} parent=11 // pred_check_branch
        %240 = sbr.rel (%p238) target = $region20
      $region19: #{convblock1d_forward.4} parent=11 // pred_region
        _
      $region20: #{convblock1d_forward.4} parent=11 // pred_fallthru
        _
      // Predicated region
      $region21: #{convblock1d_forward.4} parent=11 // pred_check
        %p241 = pneg %p145
      $region22: #{convblock1d_forward.4} parent=11 // pred_check_branch
        %243 = sbr.rel (%p241) target = $region24
      $region23: #{convblock1d_forward.4} parent=11 // pred_region
        _
      $region24: #{convblock1d_forward.4} parent=11 // pred_fallthru
        _
      // Predicated region
      $region25: #{convblock1d_forward.4} parent=11 // pred_check
        %p244 = pneg %p166
      $region26: #{convblock1d_forward.4} parent=11 // pred_check_branch
        %246 = sbr.rel (%p244) target = $region28
      $region27: #{convblock1d_forward.4} parent=11 // pred_region
        _
      $region28: #{convblock1d_forward.4} parent=11 // pred_fallthru
        _
    $region12: #{convblock1d_forward.4} parent=5 // pred_fallthru
      _
    %p247 = scmp.lt.s32.totalorder %s14, 2
    // Predicated region
    $region29: #{convblock1d_forward.4} parent=5 // pred_check
      %p248 = pneg %p247
    $region30: #{convblock1d_forward.4} parent=5 // pred_check_branch
      %250 = sbr.rel (%p248) target = $region32
    $region31: #{convblock1d_forward.4} parent=5 // pred_region
      // Predicated region
      $region33: #{convblock1d_forward.4} parent=31 // pred_check
        %p251 = pneg %p48
      $region34: #{convblock1d_forward.4} parent=31 // pred_check_branch
        %253 = sbr.rel (%p251) target = $region36
      $region35: #{convblock1d_forward.4} parent=31 // pred_region
        %p254 = scmp.lt.s32.totalorder %s21, 1
        %s255 = scalar_select %p254, %s21, 1
        %p256 = scmp.lt.s32.totalorder %s22, 0
        %s257 = scalar_select %p256, %s22, 0
        %s258 = sadd.s32 %s257, %s255
        %s259 = smul.addr %s258, 8
        %s260 = scalar_lea.vmem %s0, %s259
      $region36: #{convblock1d_forward.4} parent=31 // pred_fallthru
        _
      // Predicated region
      $region37: #{convblock1d_forward.4} parent=31 // pred_check
        %p261 = pneg %p76
      $region38: #{convblock1d_forward.4} parent=31 // pred_check_branch
        %263 = sbr.rel (%p261) target = $region40
      $region39: #{convblock1d_forward.4} parent=31 // pred_region
        %p264 = scmp.lt.s32.totalorder %s21, 1
        %s265 = scalar_select %p264, %s21, 1
        %p266 = scmp.lt.s32.totalorder %s22, 0
        %s267 = scalar_select %p266, %s22, 0
        %s268 = sadd.s32 %s267, %s265
        %s269 = smul.addr %s268, 8
        %s270 = scalar_lea.vmem %s1, %s269
      $region40: #{convblock1d_forward.4} parent=31 // pred_fallthru
        _
    $region32: #{convblock1d_forward.4} parent=5 // pred_fallthru
      _
    %p271 = scmp.le.s32.totalorder 1, %s14
    %p272 = scmp.lt.s32.totalorder %s14, 3
    %p273 = pnand %p271, %p272
    %p274 = pneg %p273
    // Predicated region
    $region41: #{convblock1d_forward.4} parent=5 // pred_check
      _
    $region42: #{convblock1d_forward.4} parent=5 // pred_check_branch
      %276 = sbr.rel (%p273) target = $region44
    $region43: #{convblock1d_forward.4} parent=5 // pred_region
      %s277 = ssub.s32 %s14, 1
      %p278 = scmp.lt.s32.totalorder %s23, 1
      %s279 = scalar_select %p278, %s23, 1
      %p280 = scmp.lt.s32.totalorder %s24, 0
      %s281 = scalar_select %p280, %s24, 0
      %s282 = sadd.s32 %s281, %s279
      %s283 = smul.addr %s282, 8
      %s284 = scalar_lea.vmem %s0, %s283
      %p285 = pneg %p54
      %p286 = pneg %p51
      %p287 = scmp.lt.s32.totalorder %s23, 1
      %s288 = scalar_select %p287, %s23, 1
      %p289 = scmp.lt.s32.totalorder %s24, 0
      %s290 = scalar_select %p289, %s24, 0
      %s291 = sadd.s32 %s290, %s288
      %s292 = smul.addr %s291, 8
      %s293 = scalar_lea.vmem %s1, %s292
      %p294 = pneg %p82
      %p295 = pneg %p79
      %p296 = pneg %p103
      %p297 = pneg %p100
      %p298 = pneg %p124
      %p299 = pneg %p121
      %p300 = pneg %p145
      %p301 = pneg %p142
      %p302 = pneg %p166
      %p303 = pneg %p163
      %p304 = pneg %p194
      %p305 = pneg %p191
      %p306 = scmp.lt.s32.totalorder %s23, 1
      %s307 = scalar_select %p306, %s23, 1
      %p308 = scmp.lt.s32.totalorder %s24, 0
      %s309 = scalar_select %p308, %s24, 0
      %s310 = sadd.s32 %s309, %s307
      %s311 = smul.addr %s310, 8
      %s312 = scalar_lea.vmem %s6, %s311
      %p313 = pneg %p220
      %p314 = pneg %p217
      %p315 = scmp.lt.s32.totalorder %s23, 1
      %s316 = scalar_select %p315, %s23, 1
      %s317 = smul.addr %s316, 8
      %s318 = scalar_lea.vmem %s7, %s317
      %p319 = scmp.lt.s32.totalorder %s23, 1
      %s320 = scalar_select %p319, %s23, 1
      %p321 = scmp.lt.s32.totalorder %s24, 0
      %s322 = scalar_select %p321, %s24, 0
      %s323 = sadd.s32 %s322, %s320
      %s324 = smul.addr %s323, 8
      %s325 = scalar_lea.vmem %s0, %s324
      %p326 = scmp.lt.s32.totalorder %s23, 1
      %s327 = scalar_select %p326, %s23, 1
      %p328 = scmp.lt.s32.totalorder %s24, 0
      %s329 = scalar_select %p328, %s24, 0
      %s330 = sadd.s32 %s329, %s327
      %s331 = smul.addr %s330, 8
      %s332 = scalar_lea.vmem %s1, %s331
      %p333 = scmp.lt.s32.totalorder %s23, 1
      %s334 = scalar_select %p333, %s23, 1
      %p335 = scmp.lt.s32.totalorder %s24, 0
      %s336 = scalar_select %p335, %s24, 0
      %s337 = sadd.s32 %s336, %s334
      %s338 = smul.addr %s337, 8
      %s339 = scalar_lea.vmem %s6, %s338
      %p340 = scmp.lt.s32.totalorder %s23, 1
      %s341 = scalar_select %p340, %s23, 1
      %s342 = smul.addr %s341, 8
      %s343 = scalar_lea.vmem %s7, %s342
      %p344 = scmp.eq.s32.totalorder %s24, 0
      // Predicated region
      $region45: #{convblock1d_forward.4} parent=43 // pred_check
        %p345 = pneg %p344
      $region46: #{convblock1d_forward.4} parent=43 // pred_check_branch
        %347 = sbr.rel (%p345) target = $region48
      $region47: #{convblock1d_forward.4} parent=43 // pred_region
        %vm348 = vcmask 7168
        %349 = vst.msk [vmem:[#allocation2] sm:$0xff] %vm348, 0.0
        %350 = vst.msk [vmem:[#allocation3] sm:$0xff] %vm348, 0.0
      $region48: #{convblock1d_forward.4} parent=43 // pred_fallthru
        _
      %v351 = vlaneseq
      %v352 = vand.u32 %v351, 127
      %vm353 = vcmp.eq.s32.totalorder %v352, 0
      %vm354 = vcmp.eq.s32.totalorder %v352, 127
      %s355 = smul.u32 %s24, 128
      %v356 = vstv %s355
      %v357 = vadd.s32 %v352, %v356
      %vm358 = vcmp.lt.s32.totalorder %v357, 16
      %v359 = vld [vmem:[%s2] sm:$0xff]
      %v360 = vld [vmem:[%s3] sm:$0xff]
      %v361 = vld [vmem:[%s5] sm:$0xff]
      %v362 = vld [vmem:[%s325] sm:$0xff]
      %364 = vset.pattern.permute.xlu0 0
      %365 = vperm.xlu0 %364, %v359
      %v366 = vpop.permute.xlu0 %365
      %v368 = vmul.f32 %v366, %v362
      %370 = vset.pattern.permute.xlu0 0
      %371 = vperm.xlu0 %370, %v360
      %v372 = vpop.permute.xlu0 %371
      %v374 = vadd.f32 %v368, %v372
      %v375 = vmax.f32 %v374, 0.0
      %v376 = vsel %vm358, %v375, 0.0
      %v377 = vld [vmem:[%s332] sm:$0xff]
      %379 = vset.pattern.permute.xlu0 0
      %380 = vperm.xlu0 %379, %v377
      %v381 = vpop.permute.xlu0 %380
      %383 = vrot.lane.b32.xlu0 %v376, 1
      %v384 = vpop.permute.xlu0 %383
      %v385 = vsel %vm353, %v381, %v384
      %386 = vset.pattern.permute.xlu0 1
      %387 = vperm.xlu0 %386, %v377
      %v388 = vpop.permute.xlu0 %387
      %390 = vrot.lane.b32.xlu0 %v376, 127
      %v391 = vpop.permute.xlu0 %390
      %v392 = vsel %vm354, %v388, %v391
      %v393 = vld [vmem:[%s4] sm:$0xff]
      %vm394 = vcmask 195584
      %v396 = vsel %vm394, %v393, 0
      %398 = vmatpush.msra.mxu0 0.0
      %399 = vmatpush.msra.mxu0 0.0
      %400 = vmatpush.msra.mxu0 0.0
      %401 = vmatpush.msra.mxu0 0.0
      %402 = vmatpush.msra.mxu0 0.0
      %403 = vmatpush.msra.mxu0 0.0
      %404 = vmatpush.msra.mxu0 0.0
      %405 = vmatpush.msra.mxu0 0.0
      %406 = vmatpush.msra.mxu0 0.0
      %407 = vmatpush.msra.mxu0 0.0
      %408 = vmatpush.msra.mxu0 0.0
      %409 = vmatpush.msra.mxu0 0.0
      %410 = vmatpush.msra.mxu0 0.0
      %411 = vmatpush.msra.mxu0 %v392
      %412 = vmatpush.msra.mxu0 %v376
      %413 = vmatpush.msra.mxu0 %v385
      %414 = vmatmul.f32.gmra.mxu0 %v396
      %v415 = vpop.f32.mrf.mxu0
      %v416 = vadd.f32 0.0, %v415
      %417 = vdwg.mxu0
      %v418 = vsel %vm358, %v416, 0.0
      %419 = vadd.xlane.f32.xlu0 %v418
      %v420 = vpop.xlane.xlu0 %419
      %v421 = vadd.f32 %v420, 0.0
      %v422 = vmul.f32 %v418, %v418
      %423 = vadd.xlane.f32.xlu0 %v422
      %v424 = vpop.xlane.xlu0 %423
      %v425 = vadd.f32 %v424, 0.0
      %427 = vset.pattern.permute.xlu0 0
      %428 = vperm.xlu0 %427, %v361
      %v429 = vpop.permute.xlu0 %428
      %v431 = vadd.f32 %v416, %v429
      %432 = vst [vmem:[%s339] sm:$0xff] %v431
      %v433 = vld [vmem:[#allocation2] sm:$0xff]
      %v434 = vadd.f32 %v433, %v421
      %vm435 = vcmask 7168
      %436 = vst.msk [vmem:[#allocation2] sm:$0xff] %vm435, %v434
      %v437 = vld [vmem:[#allocation3] sm:$0xff]
      %v438 = vadd.f32 %v437, %v425
      %439 = vst.msk [vmem:[#allocation3] sm:$0xff] %vm435, %v438
      // Predicated region
      $region49: #{convblock1d_forward.4} parent=43 // pred_check
        %p440 = pneg %p344
      $region50: #{convblock1d_forward.4} parent=43 // pred_check_branch
        %442 = sbr.rel (%p440) target = $region52
      $region51: #{convblock1d_forward.4} parent=43 // pred_region
        %v443 = vld [vmem:[#allocation2] sm:$0xff]
        %444 = vst.msk [vmem:[%s343] sm:$0xff] %vm435, %v443
        %v445 = vld [vmem:[#allocation3] sm:$0xff]
        %447 = vrot.lane.b32.xlu0 %v445, 1
        %v448 = vpop.permute.xlu0 %447
        %vm450 = vcmask 15368
        %451 = vst.msk [vmem:[%s343] sm:$0xff] %vm450, %v448
      $region52: #{convblock1d_forward.4} parent=43 // pred_fallthru
        _
      %p452 = scmp.lt.s32.totalorder %s23, 1
      %s453 = scalar_select %p452, %s23, 1
      %p454 = scmp.lt.s32.totalorder %s24, 0
      %s455 = scalar_select %p454, %s24, 0
      %s456 = sadd.s32 %s455, %s453
      %s457 = smul.addr %s456, 8
      %s458 = scalar_lea.vmem %s6, %s457
      %p459 = scmp.lt.s32.totalorder %s23, 1
      %s460 = scalar_select %p459, %s23, 1
      %s461 = smul.addr %s460, 8
      %s462 = scalar_lea.vmem %s7, %s461
      // Predicated region
      $region53: #{convblock1d_forward.4} parent=43 // pred_check
        %p463 = pneg %p191
      $region54: #{convblock1d_forward.4} parent=43 // pred_check_branch
        %465 = sbr.rel (%p463) target = $region56
      $region55: #{convblock1d_forward.4} parent=43 // pred_region
        _
      $region56: #{convblock1d_forward.4} parent=43 // pred_fallthru
        _
      // Predicated region
      $region57: #{convblock1d_forward.4} parent=43 // pred_check
        %p466 = pneg %p217
      $region58: #{convblock1d_forward.4} parent=43 // pred_check_branch
        %468 = sbr.rel (%p466) target = $region60
      $region59: #{convblock1d_forward.4} parent=43 // pred_region
        _
      $region60: #{convblock1d_forward.4} parent=43 // pred_fallthru
        _
    $region44: #{convblock1d_forward.4} parent=5 // pred_fallthru
      _
    %p469 = scmp.le.s32.totalorder 2, %s14
    // Predicated region
    $region61: #{convblock1d_forward.4} parent=5 // pred_check
      %p470 = pneg %p469
    $region62: #{convblock1d_forward.4} parent=5 // pred_check_branch
      %472 = sbr.rel (%p470) target = $region64
    $region63: #{convblock1d_forward.4} parent=5 // pred_region
      %s473 = ssub.s32 %s14, 2
      // Predicated region
      $region65: #{convblock1d_forward.4} parent=63 // pred_check
        %p474 = pneg %p197
      $region66: #{convblock1d_forward.4} parent=63 // pred_check_branch
        %476 = sbr.rel (%p474) target = $region68
      $region67: #{convblock1d_forward.4} parent=63 // pred_region
        %p477 = scmp.lt.s32.totalorder %s25, 1
        %s478 = scalar_select %p477, %s25, 1
        %p479 = scmp.lt.s32.totalorder %s26, 0
        %s480 = scalar_select %p479, %s26, 0
        %s481 = sadd.s32 %s480, %s478
        %s482 = smul.addr %s481, 8
        %s483 = scalar_lea.vmem %s6, %s482
      $region68: #{convblock1d_forward.4} parent=63 // pred_fallthru
        _
      // Predicated region
      $region69: #{convblock1d_forward.4} parent=63 // pred_check
        %p484 = pneg %p223
      $region70: #{convblock1d_forward.4} parent=63 // pred_check_branch
        %486 = sbr.rel (%p484) target = $region72
      $region71: #{convblock1d_forward.4} parent=63 // pred_region
        %p487 = scmp.lt.s32.totalorder %s25, 1
        %s488 = scalar_select %p487, %s25, 1
        %s489 = smul.addr %s488, 8
        %s490 = scalar_lea.vmem %s7, %s489
      $region72: #{convblock1d_forward.4} parent=63 // pred_fallthru
        _
    $region64: #{convblock1d_forward.4} parent=5 // pred_fallthru
      _
  $region6: #{convblock1d_forward.4} parent=0 // loop_footer
    %s18 = sadd.s32 1, %s14
  $region7: #{convblock1d_forward.4} parent=0 // loop_footer_branch
    %13 = sbr.rel target = $region3
  $region8: #{convblock1d_forward.4} parent=0 // loop_exit
    _

// kernel: convblock1d_forward.3
$region0: #{convblock1d_forward.3}
  #allocation0 [shape = 'u32[]', space=smem, size = 0x4, offset = 0x4, fixed_abs, tag = 'smem constant byte address 0x4 - core index']
  #allocation1 [shape = 'u32[72,128]{1,0:T(1,128)}', space=vmem, size = 0x9000, scoped, tag = 'internal scratch']
  #allocation2 [shape = 'f32[8,1]{1,0:T(8,128)}', space=vmem, size = 0x1000, scoped, tag = 'scratch operand']
  #allocation3 [shape = 'f32[8,1]{1,0:T(8,128)}', space=vmem, size = 0x1000, scoped, tag = 'scratch operand']
  %s0 = inlined_call_operand.vmem [shape: f32[2,4,128], index: 0, kind: input, shape index: {}]
  %s1 = inlined_call_operand.vmem [shape: f32[2,1,4,2], index: 1, kind: input, shape index: {}]
  %s2 = inlined_call_operand.vmem [shape: f32[3,8,4], index: 2, kind: input, shape index: {}]
  %s3 = inlined_call_operand.vmem [shape: f32[8,1], index: 3, kind: input, shape index: {}]
  %s4 = inlined_call_operand.vmem [shape: f32[2,8,128], index: 4, kind: output, shape index: {0}]
  %s5 = inlined_call_operand.hbm [shape: f32[2,1,8,2], index: 5, kind: output, shape index: {1}]
  %s6 = inlined_call_operand.vmem [shape: f32[2,8,2], index: 6, kind: output, shape index: {2}]
  %7 = xla_tuple %s4, %s5, %s6
  %s8 = sld [smem:[#allocation0]]
  $region73: #{convblock1d_forward.3} parent=0
    _
  %s10 = ssub.s32 1, %s8
  %s11 = scalar_select 0, %s10, %s8
  $region1: #{convblock1d_forward.3} parent=0
    #allocation4 [shape = 'u8[8192]{0}', space=vmem, size = 0x2000, scoped, tag = 'output window, operand 1']
    #allocation5 [shape = 's32[2]{0}', space=sflag, size = 0x8, scoped, tag = 'scoped memory for convblock1d_forward.3']
    %12 = vsyncpa [#allocation5], 0
    %s13 = scalar_lea.sflag [#allocation5], 1
    %14 = vsyncpa %s13, 0
    loop: start=0, step=1, limit=4
    $region2: #{convblock1d_forward.3} parent=1 // loop_pre_header
      _
    $region3: #{convblock1d_forward.3} parent=1 // loop_header
      %s16 = sphi 0, %s20
      %p17 = scmp.ge.s32.totalorder %s16, 4
      %s23 = sphi 0, %s35
      %s24 = sphi 0, %s31
      %s25 = sphi 0, %s23
      %s26 = sphi 0, %s24
      %s27 = sphi 0, %s25
      %s28 = sphi 0, %s26
      %s40 = sphi 0, %s42
      %s43 = sphi 0, %s40
      %s44 = sphi 0, %s43
      %s60 = sphi 0, %s44
      %s68 = sphi 0, %s70
      %s71 = sphi 0, %s68
      %s72 = sphi 0, %s71
      %s88 = sphi 0, %s72
      %s92 = sphi 0, %s92
      %s94 = sphi 0, %s92
      %s95 = sphi 0, %s94
      %s109 = sphi 0, %s95
      %s113 = sphi 0, %s113
      %s115 = sphi 0, %s113
      %s116 = sphi 0, %s115
      %s130 = sphi 0, %s116
      %s138 = sphi 0, %s140
      %s141 = sphi 0, %s138
      %s142 = sphi 0, %s141
      %s158 = sphi 0, %s142
      %s166 = sphi 0, %s168
      %s169 = sphi 0, %s166
      %s170 = sphi 0, %s169
      %s186 = sphi 0, %s170
      %s192 = sphi 0, %s194
      %s195 = sphi 0, %s192
      %s196 = sphi 0, %s195
      %s212 = sphi 0, %s196
    $region4: #{convblock1d_forward.3} parent=1 // loop_header_branch
      %19 = sbr.rel (%p17) target = $region8
    $region5: #{convblock1d_forward.3} parent=1 // loop_body
      %s21 = ssub.s32 %s16, 1
      %s22 = ssub.s32 %s16, 2
      %s29 = sadd.s32 1, %s24
      %p30 = scmp.ge.s32.totalorder %s29, 1
      %s31 = scalar_select %p30, 0, %s29
      %s32 = sadd.s32 1, %s23
      %s33 = scalar_select %p30, %s32, %s23
      %p34 = scmp.ge.s32.totalorder %s33, 2
      %s35 = scalar_select %p34, 0, %s33
      %s36 = ssub.s32 %s23, %s35
      %s37 = ssub.s32 %s24, %s31
      %s38 = sor.u32 %s36, %s37
      %p39 = scmp.eq.s32.totalorder %s38, 0
      %s41 = sadd.s32 %s40, 1
      %s42 = scalar_select %p39, %s40, %s41
      %p45 = pneg %p39
      %p46 = scmp.eq.s32.totalorder %s16, 1
      %p47 = por %p45, %p46
      %p48 = scmp.ne.s32.totalorder %s40, %s43
      %p49 = scmp.eq.s32.totalorder %s16, 0
      %p50 = por %p48, %p49
      %p51 = scmp.ne.s32.totalorder %s40, %s43
      %p52 = scmp.eq.s32.totalorder %s21, 1
      %p53 = por %p51, %p52
      %p54 = scmp.ne.s32.totalorder %s43, %s44
      %p55 = scmp.eq.s32.totalorder %s21, 0
      %p56 = por %p54, %p55
      %p57 = scmp.ne.s32.totalorder %s43, %s44
      %p58 = scmp.eq.s32.totalorder %s22, 1
      %p59 = por %p57, %p58
      %p61 = scmp.ne.s32.totalorder %s44, %s60
      %p62 = scmp.eq.s32.totalorder %s22, 0
      %p63 = por %p61, %p62
      %s64 = ssub.s32 %s23, %s35
      %s65 = ssub.s32 %s24, %s31
      %s66 = sor.u32 %s64, %s65
      %p67 = scmp.eq.s32.totalorder %s66, 0
      %s69 = sadd.s32 %s68, 1
      %s70 = scalar_select %p67, %s68, %s69
      %p73 = pneg %p67
      %p74 = scmp.eq.s32.totalorder %s16, 1
      %p75 = por %p73, %p74
      %p76 = scmp.ne.s32.totalorder %s68, %s71
      %p77 = scmp.eq.s32.totalorder %s16, 0
      %p78 = por %p76, %p77
      %p79 = scmp.ne.s32.totalorder %s68, %s71
      %p80 = scmp.eq.s32.totalorder %s21, 1
      %p81 = por %p79, %p80
      %p82 = scmp.ne.s32.totalorder %s71, %s72
      %p83 = scmp.eq.s32.totalorder %s21, 0
      %p84 = por %p82, %p83
      %p85 = scmp.ne.s32.totalorder %s71, %s72
      %p86 = scmp.eq.s32.totalorder %s22, 1
      %p87 = por %p85, %p86
      %p89 = scmp.ne.s32.totalorder %s72, %s88
      %p90 = scmp.eq.s32.totalorder %s22, 0
      %p91 = por %p89, %p90
      %s93 = sadd.s32 %s92, 1
      %p96 = scmp.eq.s32.totalorder %s16, 1
      %p97 = scmp.ne.s32.totalorder %s92, %s94
      %p98 = scmp.eq.s32.totalorder %s16, 0
      %p99 = por %p97, %p98
      %p100 = scmp.ne.s32.totalorder %s92, %s94
      %p101 = scmp.eq.s32.totalorder %s21, 1
      %p102 = por %p100, %p101
      %p103 = scmp.ne.s32.totalorder %s94, %s95
      %p104 = scmp.eq.s32.totalorder %s21, 0
      %p105 = por %p103, %p104
      %p106 = scmp.ne.s32.totalorder %s94, %s95
      %p107 = scmp.eq.s32.totalorder %s22, 1
      %p108 = por %p106, %p107
      %p110 = scmp.ne.s32.totalorder %s95, %s109
      %p111 = scmp.eq.s32.totalorder %s22, 0
      %p112 = por %p110, %p111
      %s114 = sadd.s32 %s113, 1
      %p117 = scmp.eq.s32.totalorder %s16, 1
      %p118 = scmp.ne.s32.totalorder %s113, %s115
      %p119 = scmp.eq.s32.totalorder %s16, 0
      %p120 = por %p118, %p119
      %p121 = scmp.ne.s32.totalorder %s113, %s115
      %p122 = scmp.eq.s32.totalorder %s21, 1
      %p123 = por %p121, %p122
      %p124 = scmp.ne.s32.totalorder %s115, %s116
      %p125 = scmp.eq.s32.totalorder %s21, 0
      %p126 = por %p124, %p125
      %p127 = scmp.ne.s32.totalorder %s115, %s116
      %p128 = scmp.eq.s32.totalorder %s22, 1
      %p129 = por %p127, %p128
      %p131 = scmp.ne.s32.totalorder %s116, %s130
      %p132 = scmp.eq.s32.totalorder %s22, 0
      %p133 = por %p131, %p132
      %s134 = ssub.s32 %s23, %s35
      %s135 = ssub.s32 %s24, %s31
      %s136 = sor.u32 %s134, %s135
      %p137 = scmp.eq.s32.totalorder %s136, 0
      %s139 = sadd.s32 %s138, 1
      %s140 = scalar_select %p137, %s138, %s139
      %p143 = pneg %p137
      %p144 = scmp.eq.s32.totalorder %s16, 1
      %p145 = por %p143, %p144
      %p146 = scmp.ne.s32.totalorder %s138, %s141
      %p147 = scmp.eq.s32.totalorder %s16, 0
      %p148 = por %p146, %p147
      %p149 = scmp.ne.s32.totalorder %s138, %s141
      %p150 = scmp.eq.s32.totalorder %s21, 1
      %p151 = por %p149, %p150
      %p152 = scmp.ne.s32.totalorder %s141, %s142
      %p153 = scmp.eq.s32.totalorder %s21, 0
      %p154 = por %p152, %p153
      %p155 = scmp.ne.s32.totalorder %s141, %s142
      %p156 = scmp.eq.s32.totalorder %s22, 1
      %p157 = por %p155, %p156
      %p159 = scmp.ne.s32.totalorder %s142, %s158
      %p160 = scmp.eq.s32.totalorder %s22, 0
      %p161 = por %p159, %p160
      %s162 = ssub.s32 %s23, %s35
      %s163 = ssub.s32 %s24, %s31
      %s164 = sor.u32 %s162, %s163
      %p165 = scmp.eq.s32.totalorder %s164, 0
      %s167 = sadd.s32 %s166, 1
      %s168 = scalar_select %p165, %s166, %s167
      %p171 = pneg %p165
      %p172 = scmp.eq.s32.totalorder %s16, 1
      %p173 = por %p171, %p172
      %p174 = scmp.ne.s32.totalorder %s166, %s169
      %p175 = scmp.eq.s32.totalorder %s16, 0
      %p176 = por %p174, %p175
      %p177 = scmp.ne.s32.totalorder %s166, %s169
      %p178 = scmp.eq.s32.totalorder %s21, 1
      %p179 = por %p177, %p178
      %p180 = scmp.ne.s32.totalorder %s169, %s170
      %p181 = scmp.eq.s32.totalorder %s21, 0
      %p182 = por %p180, %p181
      %p183 = scmp.ne.s32.totalorder %s169, %s170
      %p184 = scmp.eq.s32.totalorder %s22, 1
      %p185 = por %p183, %p184
      %p187 = scmp.ne.s32.totalorder %s170, %s186
      %p188 = scmp.eq.s32.totalorder %s22, 0
      %p189 = por %p187, %p188
      %s190 = ssub.s32 %s23, %s35
      %p191 = scmp.eq.s32.totalorder %s190, 0
      %s193 = sadd.s32 %s192, 1
      %s194 = scalar_select %p191, %s192, %s193
      %p197 = pneg %p191
      %p198 = scmp.eq.s32.totalorder %s16, 1
      %p199 = por %p197, %p198
      %p200 = scmp.ne.s32.totalorder %s192, %s195
      %p201 = scmp.eq.s32.totalorder %s16, 0
      %p202 = por %p200, %p201
      %p203 = scmp.ne.s32.totalorder %s192, %s195
      %p204 = scmp.eq.s32.totalorder %s21, 1
      %p205 = por %p203, %p204
      %p206 = scmp.ne.s32.totalorder %s195, %s196
      %p207 = scmp.eq.s32.totalorder %s21, 0
      %p208 = por %p206, %p207
      %p209 = scmp.ne.s32.totalorder %s195, %s196
      %p210 = scmp.eq.s32.totalorder %s22, 1
      %p211 = por %p209, %p210
      %p213 = scmp.ne.s32.totalorder %s196, %s212
      %p214 = scmp.eq.s32.totalorder %s22, 0
      %p215 = por %p213, %p214
      %p216 = scmp.le.s32.totalorder 1, %s16
      %p217 = scmp.lt.s32.totalorder %s16, 3
      %p218 = pnand %p216, %p217
      %p219 = pneg %p218
      // Predicated region
      $region9: #{convblock1d_forward.3} parent=5 // pred_check
        _
      $region10: #{convblock1d_forward.3} parent=5 // pred_check_branch
        %221 = sbr.rel (%p218) target = $region12
      $region11: #{convblock1d_forward.3} parent=5 // pred_region
        %s222 = ssub.s32 %s16, 1
        // Predicated region
        $region13: #{convblock1d_forward.3} parent=11 // pred_check
          %p223 = pneg %p105
        $region14: #{convblock1d_forward.3} parent=11 // pred_check_branch
          %225 = sbr.rel (%p223) target = $region16
        $region15: #{convblock1d_forward.3} parent=11 // pred_region
          _
        $region16: #{convblock1d_forward.3} parent=11 // pred_fallthru
          _
        // Predicated region
        $region17: #{convblock1d_forward.3} parent=11 // pred_check
          %p226 = pneg %p126
        $region18: #{convblock1d_forward.3} parent=11 // pred_check_branch
          %228 = sbr.rel (%p226) target = $region20
        $region19: #{convblock1d_forward.3} parent=11 // pred_region
          _
        $region20: #{convblock1d_forward.3} parent=11 // pred_fallthru
          _
      $region12: #{convblock1d_forward.3} parent=5 // pred_fallthru
        _
      %p229 = scmp.lt.s32.totalorder %s16, 2
      // Predicated region
      $region21: #{convblock1d_forward.3} parent=5 // pred_check
        %p230 = pneg %p229
      $region22: #{convblock1d_forward.3} parent=5 // pred_check_branch
        %232 = sbr.rel (%p230) target = $region24
      $region23: #{convblock1d_forward.3} parent=5 // pred_region
        // Predicated region
        $region25: #{convblock1d_forward.3} parent=23 // pred_check
          %p233 = pneg %p50
        $region26: #{convblock1d_forward.3} parent=23 // pred_check_branch
          %235 = sbr.rel (%p233) target = $region28
        $region27: #{convblock1d_forward.3} parent=23 // pred_region
          %p236 = scmp.lt.s32.totalorder %s23, 1
          %s237 = scalar_select %p236, %s23, 1
          %p238 = scmp.lt.s32.totalorder %s24, 0
          %s239 = scalar_select %p238, %s24, 0
          %s240 = sadd.s32 %s239, %s237
          %s241 = smul.addr %s240, 4
          %s242 = scalar_lea.vmem %s0, %s241
        $region28: #{convblock1d_forward.3} parent=23 // pred_fallthru
          _
        // Predicated region
        $region29: #{convblock1d_forward.3} parent=23 // pred_check
          %p243 = pneg %p78
        $region30: #{convblock1d_forward.3} parent=23 // pred_check_branch
          %245 = sbr.rel (%p243) target = $region32
        $region31: #{convblock1d_forward.3} parent=23 // pred_region
          %p246 = scmp.lt.s32.totalorder %s23, 1
          %s247 = scalar_select %p246, %s23, 1
          %p248 = scmp.lt.s32.totalorder %s24, 0
          %s249 = scalar_select %p248, %s24, 0
          %s250 = sadd.s32 %s249, %s247
          %s251 = smul.addr %s250, 4
          %s252 = scalar_lea.vmem %s1, %s251
        $region32: #{convblock1d_forward.3} parent=23 // pred_fallthru
          _
      $region24: #{convblock1d_forward.3} parent=5 // pred_fallthru
        _
      %p253 = scmp.le.s32.totalorder 1, %s16
      %p254 = scmp.lt.s32.totalorder %s16, 3
      %p255 = pnand %p253, %p254
      %p256 = pneg %p255
      // Predicated region
      $region33: #{convblock1d_forward.3} parent=5 // pred_check
        _
      $region34: #{convblock1d_forward.3} parent=5 // pred_check_branch
        %258 = sbr.rel (%p255) target = $region36
      $region35: #{convblock1d_forward.3} parent=5 // pred_region
        %s259 = ssub.s32 %s16, 1
        %p260 = scmp.lt.s32.totalorder %s25, 1
        %s261 = scalar_select %p260, %s25, 1
        %p262 = scmp.lt.s32.totalorder %s26, 0
        %s263 = scalar_select %p262, %s26, 0
        %s264 = sadd.s32 %s263, %s261
        %s265 = smul.addr %s264, 4
        %s266 = scalar_lea.vmem %s0, %s265
        %p267 = pneg %p56
        %p268 = pneg %p53
        %p269 = scmp.lt.s32.totalorder %s25, 1
        %s270 = scalar_select %p269, %s25, 1
        %p271 = scmp.lt.s32.totalorder %s26, 0
        %s272 = scalar_select %p271, %s26, 0
        %s273 = sadd.s32 %s272, %s270
        %s274 = smul.addr %s273, 4
        %s275 = scalar_lea.vmem %s1, %s274
        %p276 = pneg %p84
        %p277 = pneg %p81
        %p278 = pneg %p105
        %p279 = pneg %p102
        %p280 = pneg %p126
        %p281 = pneg %p123
        %p282 = pneg %p154
        %p283 = pneg %p151
        %p284 = scmp.lt.s32.totalorder %s25, 1
        %s285 = scalar_select %p284, %s25, 1
        %p286 = scmp.lt.s32.totalorder %s26, 0
        %s287 = scalar_select %p286, %s26, 0
        %s288 = sadd.s32 %s287, %s285
        %s289 = smul.addr %s288, 8
        %s290 = scalar_lea.vmem %s4, %s289
        %p291 = pneg %p182
        %p292 = pneg %p179
        %s293 = sand.u32 %s169, 1
        %s294 = scalar_lea.sflag [#allocation5], %s293
        %s295 = sand.u32 %s169, 1
        %s296 = smul.addr %s295, 8
        %s297 = scalar_lea.vmem [#allocation4], %s296
        %p298 = pneg %p208
        %p299 = pneg %p205
        %p300 = scmp.lt.s32.totalorder %s25, 1
        %s301 = scalar_select %p300, %s25, 1
        %s302 = smul.addr %s301, 8
        %s303 = scalar_lea.vmem %s6, %s302
        %p304 = scmp.lt.s32.totalorder %s25, 1
        %s305 = scalar_select %p304, %s25, 1
        %p306 = scmp.lt.s32.totalorder %s26, 0
        %s307 = scalar_select %p306, %s26, 0
        %s308 = sadd.s32 %s307, %s305
        %s309 = smul.addr %s308, 4
        %s310 = scalar_lea.vmem %s0, %s309
        %p311 = scmp.lt.s32.totalorder %s25, 1
        %s312 = scalar_select %p311, %s25, 1
        %p313 = scmp.lt.s32.totalorder %s26, 0
        %s314 = scalar_select %p313, %s26, 0
        %s315 = sadd.s32 %s314, %s312
        %s316 = smul.addr %s315, 4
        %s317 = scalar_lea.vmem %s1, %s316
        %p318 = scmp.lt.s32.totalorder %s25, 1
        %s319 = scalar_select %p318, %s25, 1
        %p320 = scmp.lt.s32.totalorder %s26, 0
        %s321 = scalar_select %p320, %s26, 0
        %s322 = sadd.s32 %s321, %s319
        %s323 = smul.addr %s322, 8
        %s324 = scalar_lea.vmem %s4, %s323
        %p325 = scmp.lt.s32.totalorder %s25, 1
        %s326 = scalar_select %p325, %s25, 1
        %s327 = smul.addr %s326, 8
        %s328 = scalar_lea.vmem %s6, %s327
        %p329 = scmp.eq.s32.totalorder %s26, 0
        // Predicated region
        $region37: #{convblock1d_forward.3} parent=35 // pred_check
          %p330 = pneg %p329
        $region38: #{convblock1d_forward.3} parent=35 // pred_check_branch
          %332 = sbr.rel (%p330) target = $region40
        $region39: #{convblock1d_forward.3} parent=35 // pred_region
          %vm333 = vcmask 7168
          %334 = vst.msk [vmem:[#allocation2] sm:$0xff] %vm333, 0.0
          %335 = vst.msk [vmem:[#allocation3] sm:$0xff] %vm333, 0.0
        $region40: #{convblock1d_forward.3} parent=35 // pred_fallthru
          _
        %v336 = vlaneseq
        %v337 = vand.u32 %v336, 127
        %vm338 = vcmp.eq.s32.totalorder %v337, 0
        %vm339 = vcmp.eq.s32.totalorder %v337, 127
        %s340 = smul.u32 %s26, 128
        %v341 = vstv %s340
        %v342 = vadd.s32 %v337, %v341
        %vm343 = vcmp.lt.s32.totalorder %v342, 16
        %v344 = vld [vmem:[%s3] sm:$0xff]
        %v345 = vld [vmem:[%s310] sm:$0xf]
        %v346 = vld [vmem:[%s317] sm:$0xf]
        %348 = vset.pattern.permute.xlu0 0
        %349 = vperm.xlu0 %348, %v346
        %v350 = vpop.permute.xlu0 %349
        %352 = vrot.lane.b32.xlu0 %v345, 1
        %v353 = vpop.permute.xlu0 %352
        %v354 = vsel %vm338, %v350, %v353
        %355 = vset.pattern.permute.xlu0 1
        %356 = vperm.xlu0 %355, %v346
        %v357 = vpop.permute.xlu0 %356
        %359 = vrot.lane.b32.xlu0 %v345, 127
        %v360 = vpop.permute.xlu0 %359
        %v361 = vsel %vm339, %v357, %v360
        %v362 = vld [vmem:[%s2] sm:$0xff]
        %s363 = scalar_lea.vmem %s2, 8
        %v364 = vld [vmem:[%s363] sm:$0xff]
        %vm365 = vcmask 31744
        %v367 = vsel %vm365, %v364, 0
        %vm369 = vcmask 1043456
        %v371 = vsel %vm369, %v345, 0
        %373 = vmatpush.msra.mxu0 0.0
        %374 = vmatpush.msra.mxu0 0.0
        %375 = vmatpush.msra.mxu0 0.0
        %376 = vmatpush.msra.mxu0 0.0
        %377 = vmatpush.msra.mxu0 0.0
        %378 = vmatpush.msra.mxu0 0.0
        %379 = vmatpush.msra.mxu0 0.0
        %380 = vmatpush.msra.mxu0 0.0
        %381 = vmatpush.msra.mxu0 0.0
        %382 = vmatpush.msra.mxu0 0.0
        %383 = vmatpush.msra.mxu0 0.0
        %384 = vmatpush.msra.mxu0 0.0
        %385 = vmatpush.msra.mxu0 0.0
        %386 = vmatpush.msra.mxu0 0.0
        %387 = vmatpush.msra.mxu0 0.0
        %388 = vmatpush.msra.mxu0 %v371
        %389 = vmatmul.f32.gmra.mxu0 %v367
        %v390 = vpop.f32.mrf.mxu0
        %v391 = vadd.f32 0.0, %v390
        %392 = vdwg.mxu0
        %v394 = vsel %vm365, %v362, 0
        %v397 = vsel %vm369, %v354, 0
        %399 = vmatpush.msra.mxu0 0.0
        %400 = vmatpush.msra.mxu0 0.0
        %401 = vmatpush.msra.mxu0 0.0
        %402 = vmatpush.msra.mxu0 0.0
        %403 = vmatpush.msra.mxu0 0.0
        %404 = vmatpush.msra.mxu0 0.0
        %405 = vmatpush.msra.mxu0 0.0
        %406 = vmatpush.msra.mxu0 0.0
        %407 = vmatpush.msra.mxu0 0.0
        %408 = vmatpush.msra.mxu0 0.0
        %409 = vmatpush.msra.mxu0 0.0
        %410 = vmatpush.msra.mxu0 0.0
        %411 = vmatpush.msra.mxu0 0.0
        %412 = vmatpush.msra.mxu0 0.0
        %413 = vmatpush.msra.mxu0 0.0
        %414 = vmatpush.msra.mxu0 %v397
        %415 = vmatmul.f32.gmra.mxu0 %v394
        %v416 = vpop.f32.mrf.mxu0
        %v417 = vadd.f32 %v391, %v416
        %418 = vdwg.mxu0
        %s419 = scalar_lea.vmem %s2, 16
        %v420 = vld [vmem:[%s419] sm:$0xff]
        %v422 = vsel %vm365, %v420, 0
        %v425 = vsel %vm369, %v361, 0
        %427 = vmatpush.msra.mxu0 0.0
        %428 = vmatpush.msra.mxu0 0.0
        %429 = vmatpush.msra.mxu0 0.0
        %430 = vmatpush.msra.mxu0 0.0
        %431 = vmatpush.msra.mxu0 0.0
        %432 = vmatpush.msra.mxu0 0.0
        %433 = vmatpush.msra.mxu0 0.0
        %434 = vmatpush.msra.mxu0 0.0
        %435 = vmatpush.msra.mxu0 0.0
        %436 = vmatpush.msra.mxu0 0.0
        %437 = vmatpush.msra.mxu0 0.0
        %438 = vmatpush.msra.mxu0 0.0
        %439 = vmatpush.msra.mxu0 0.0
        %440 = vmatpush.msra.mxu0 0.0
        %441 = vmatpush.msra.mxu0 0.0
        %442 = vmatpush.msra.mxu0 %v425
        %443 = vmatmul.f32.gmra.mxu0 %v422
        %v444 = vpop.f32.mrf.mxu0
        %v445 = vadd.f32 0.0, %v444
        %446 = vdwg.mxu0
        %v447 = vadd.f32 %v417, %v445
        %v448 = vsel %vm343, %v447, 0.0
        %449 = vadd.xlane.f32.xlu0 %v448
        %v450 = vpop.xlane.xlu0 %449
        %v451 = vadd.f32 %v450, 0.0
        %v452 = vmul.f32 %v448, %v448
        %453 = vadd.xlane.f32.xlu0 %v452
        %v454 = vpop.xlane.xlu0 %453
        %v455 = vadd.f32 %v454, 0.0
        %457 = vset.pattern.permute.xlu0 0
        %458 = vperm.xlu0 %457, %v344
        %v459 = vpop.permute.xlu0 %458
        %v461 = vadd.f32 %v447, %v459
        %vm462 = vcmask 7168
        %463 = vst.msk [vmem:[%s297] sm:$0xff] %vm462, %v461
        %465 = vrot.lane.b32.xlu0 %v461, 2
        %v466 = vpop.permute.xlu0 %465
        %vm468 = vcmask 15368
        %469 = vst.msk [vmem:[%s297] sm:$0xff] %vm468, %v466
        %470 = vst [vmem:[%s324] sm:$0xff] %v461
        %v471 = vld [vmem:[#allocation2] sm:$0xff]
        %v472 = vadd.f32 %v471, %v451
        %473 = vst.msk [vmem:[#allocation2] sm:$0xff] %vm462, %v472
        %v474 = vld [vmem:[#allocation3] sm:$0xff]
        %v475 = vadd.f32 %v474, %v455
        %476 = vst.msk [vmem:[#allocation3] sm:$0xff] %vm462, %v475
        // Predicated region
        $region41: #{convblock1d_forward.3} parent=35 // pred_check
          %p477 = pneg %p329
        $region42: #{convblock1d_forward.3} parent=35 // pred_check_branch
          %479 = sbr.rel (%p477) target = $region44
        $region43: #{convblock1d_forward.3} parent=35 // pred_region
          %v480 = vld [vmem:[#allocation2] sm:$0xff]
          %481 = vst.msk [vmem:[%s328] sm:$0xff] %vm462, %v480
          %v482 = vld [vmem:[#allocation3] sm:$0xff]
          %484 = vrot.lane.b32.xlu0 %v482, 1
          %v485 = vpop.permute.xlu0 %484
          %487 = vst.msk [vmem:[%s328] sm:$0xff] %vm468, %v485
        $region44: #{convblock1d_forward.3} parent=35 // pred_fallthru
          _
        %p488 = scmp.lt.s32.totalorder %s25, 1
        %s489 = scalar_select %p488, %s25, 1
        %p490 = scmp.lt.s32.totalorder %s26, 0
        %s491 = scalar_select %p490, %s26, 0
        %s492 = sadd.s32 %s491, %s489
        %s493 = smul.addr %s492, 8
        %s494 = scalar_lea.vmem %s4, %s493
        %s495 = sand.u32 %s169, 1
        %s496 = scalar_lea.sflag [#allocation5], %s495
        %s497 = sand.u32 %s169, 1
        %s498 = smul.addr %s497, 8
        %s499 = scalar_lea.vmem [#allocation4], %s498
        %p500 = scmp.lt.s32.totalorder %s25, 1
        %s501 = scalar_select %p500, %s25, 1
        %s502 = smul.addr %s501, 8
        %s503 = scalar_lea.vmem %s6, %s502
        // Predicated region
        $region45: #{convblock1d_forward.3} parent=35 // pred_check
          %p504 = pneg %p151
        $region46: #{convblock1d_forward.3} parent=35 // pred_check_branch
          %506 = sbr.rel (%p504) target = $region48
        $region47: #{convblock1d_forward.3} parent=35 // pred_region
          _
        $region48: #{convblock1d_forward.3} parent=35 // pred_fallthru
          _
        // Predicated region
        $region49: #{convblock1d_forward.3} parent=35 // pred_check
          %p507 = pneg %p179
        $region50: #{convblock1d_forward.3} parent=35 // pred_check_branch
          %509 = sbr.rel (%p507) target = $region52
        $region51: #{convblock1d_forward.3} parent=35 // pred_region
          %511 = vsyncadd %s496, 0
          %s512 = sadd.s32 %s26, %s25
          %s513 = smul.addr %s512, 8
          %s514 = scalar_lea.hbm %s5, %s513
          %s516 = sshll.u32 %s499, 4
          %s517 = int_to_ptr.vmem [resolvable:$true] %s516
          %s518 = sshll.u32 %s514, 4
          %s519 = int_to_ptr.hbm [resolvable:$true] %s518
          %521 = dma.vmem_to_hbm [thread:$0]  %s517, 128, %s519, %s496
        $region52: #{convblock1d_forward.3} parent=35 // pred_fallthru
          _
        // Predicated region
        $region53: #{convblock1d_forward.3} parent=35 // pred_check
          %p522 = pneg %p205
        $region54: #{convblock1d_forward.3} parent=35 // pred_check_branch
          %524 = sbr.rel (%p522) target = $region56
        $region55: #{convblock1d_forward.3} parent=35 // pred_region
          _
        $region56: #{convblock1d_forward.3} parent=35 // pred_fallthru
          _
      $region36: #{convblock1d_forward.3} parent=5 // pred_fallthru
        _
      %p525 = scmp.le.s32.totalorder 2, %s16
      // Predicated region
      $region57: #{convblock1d_forward.3} parent=5 // pred_check
        %p526 = pneg %p525
      $region58: #{convblock1d_forward.3} parent=5 // pred_check_branch
        %528 = sbr.rel (%p526) target = $region60
      $region59: #{convblock1d_forward.3} parent=5 // pred_region
        %s529 = ssub.s32 %s16, 2
        // Predicated region
        $region61: #{convblock1d_forward.3} parent=59 // pred_check
          %p530 = pneg %p157
        $region62: #{convblock1d_forward.3} parent=59 // pred_check_branch
          %532 = sbr.rel (%p530) target = $region64
        $region63: #{convblock1d_forward.3} parent=59 // pred_region
          %p533 = scmp.lt.s32.totalorder %s27, 1
          %s534 = scalar_select %p533, %s27, 1
          %p535 = scmp.lt.s32.totalorder %s28, 0
          %s536 = scalar_select %p535, %s28, 0
          %s537 = sadd.s32 %s536, %s534
          %s538 = smul.addr %s537, 8
          %s539 = scalar_lea.vmem %s4, %s538
        $region64: #{convblock1d_forward.3} parent=59 // pred_fallthru
          _
        // Predicated region
        $region65: #{convblock1d_forward.3} parent=59 // pred_check
          %p540 = pneg %p185
        $region66: #{convblock1d_forward.3} parent=59 // pred_check_branch
          %542 = sbr.rel (%p540) target = $region68
        $region67: #{convblock1d_forward.3} parent=59 // pred_region
          %s543 = sand.u32 %s170, 1
          %s544 = scalar_lea.sflag [#allocation5], %s543
          %s545 = sand.u32 %s170, 1
          %s546 = smul.addr %s545, 8
          %s547 = scalar_lea.vmem [#allocation4], %s546
          %549 = dma.done %s544, 128
        $region68: #{convblock1d_forward.3} parent=59 // pred_fallthru
          _
        // Predicated region
        $region69: #{convblock1d_forward.3} parent=59 // pred_check
          %p550 = pneg %p211
        $region70: #{convblock1d_forward.3} parent=59 // pred_check_branch
          %552 = sbr.rel (%p550) target = $region72
        $region71: #{convblock1d_forward.3} parent=59 // pred_region
          %p553 = scmp.lt.s32.totalorder %s27, 1
          %s554 = scalar_select %p553, %s27, 1
          %s555 = smul.addr %s554, 8
          %s556 = scalar_lea.vmem %s6, %s555
        $region72: #{convblock1d_forward.3} parent=59 // pred_fallthru
          _
      $region60: #{convblock1d_forward.3} parent=5 // pred_fallthru
        _
    $region6: #{convblock1d_forward.3} parent=1 // loop_footer
      %s20 = sadd.s32 1, %s16
    $region7: #{convblock1d_forward.3} parent=1 // loop_footer_branch
      %15 = sbr.rel target = $region3
    $region8: #{convblock1d_forward.3} parent=1 // loop_exit
      _
    %557 = vsyncpa [#allocation5], 1
    %s558 = scalar_lea.sflag [#allocation5], 1
    %559 = vsyncpa %s558, 1

</llo_original>
